<compile_context>
chip_gen: v7x
topology: tpu7x:2x2x1
jax: 0.10.0
libtpu: 0.0.40
codegen_flags: <defaults>
</compile_context>

<pallas_src>
import jax
import jax.numpy as jnp
from jax import lax
from jax.experimental import pallas as pl
from jax.experimental.pallas import tpu as pltpu

EPS = 1e-5
_INV_SQRT2 = 0.7071067811865476


# ---------------------------------------------------------------------------
# Kernel A: similarity logits (bf16) + per-(batch,head) BN2d partial stats.
#   s[m,l] = sum_d key[d,m] * query[d,l]     (key arrives pre-transposed (M,D))
#   stats  = (sum(s), sum((s - mean(s))^2))  per grid step, combined in glue.
# ---------------------------------------------------------------------------
def _similarity_kernel(q_ref, kt_ref, logits_ref, sum_ref, m2_ref):
    q = q_ref[0, 0].astype(jnp.bfloat16)            # (D, L)  cast in VMEM
    kt = kt_ref[0, 0].astype(jnp.bfloat16)          # (M, D)
    s = jnp.dot(kt, q, preferred_element_type=jnp.float32)   # (M, L) f32 MXU
    logits_ref[0, 0] = s.astype(jnp.bfloat16)

    n = float(s.shape[0] * s.shape[1])
    tot = jnp.sum(s, keepdims=True)                 # (1, 1)
    d = s - tot / n
    m2 = jnp.sum(d * d, keepdims=True)              # (1, 1)
    sum_ref[...] = tot.reshape(1, 1, 1, 1)
    m2_ref[...] = m2.reshape(1, 1, 1, 1)


def similarity(query, key_md):
    N, H, D, L = query.shape
    M = key_md.shape[2]
    return pl.pallas_call(
        _similarity_kernel,
        out_shape=(jax.ShapeDtypeStruct((N, H, M, L), jnp.bfloat16),
                   jax.ShapeDtypeStruct((N, H, 1, 1), jnp.float32),
                   jax.ShapeDtypeStruct((N, H, 1, 1), jnp.float32)),
        grid=(N, H),
        in_specs=[pl.BlockSpec((1, 1, D, L), lambda b, h: (b, h, 0, 0)),
                  pl.BlockSpec((1, 1, M, D), lambda b, h: (b, h, 0, 0))],
        out_specs=(pl.BlockSpec((1, 1, M, L), lambda b, h: (b, h, 0, 0)),
                   pl.BlockSpec((1, 1, 1, 1), lambda b, h: (b, h, 0, 0)),
                   pl.BlockSpec((1, 1, 1, 1), lambda b, h: (b, h, 0, 0))),
        compiler_params=pltpu.CompilerParams(
            dimension_semantics=("parallel", "parallel")),
    )(query, key_md)


# ---------------------------------------------------------------------------
# Kernel B: folded BN2d affine + softmax(over M) + retrieval matmul,
#           output written directly in (N, H*C, L) layout + BN1d partial stats.
# ---------------------------------------------------------------------------
def _attend_kernel(scale_ref, bias_ref, logits_ref, v_ref, r_ref, sum_ref, m2_ref):
    h = pl.program_id(1)
    scale = scale_ref[h]                            # SMEM scalars (folded BN2d)
    bias = bias_ref[h]

    x = logits_ref[0, 0].astype(jnp.float32) * scale + bias     # (M, L) f32
    x = x - jnp.max(x, axis=0, keepdims=True)                   # softmax over M
    p = jnp.exp(x)
    attn = p * pl.reciprocal(jnp.sum(p, axis=0, keepdims=True), approx=True)

    v = v_ref[0, 0].astype(jnp.bfloat16)                        # (C, M)
    r = jnp.dot(v, attn.astype(jnp.bfloat16),
                preferred_element_type=jnp.float32)             # (C, L) f32 MXU
    r_ref[0] = r

    C = r.shape[0]
    n = float(r.shape[1])
    csum = jnp.sum(r, axis=1, keepdims=True)                    # (C, 1)
    d = r - csum / n
    cm2 = jnp.sum(d * d, axis=1, keepdims=True)                 # (C, 1)
    sum_ref[...] = csum.reshape(1, 1, C, 1)
    m2_ref[...] = cm2.reshape(1, 1, C, 1)


def attend(scale_h, bias_h, logits, value):
    N, H, M, L = logits.shape
    C = value.shape[2]
    Cv = H * C
    return pl.pallas_call(
        _attend_kernel,
        out_shape=(jax.ShapeDtypeStruct((N, Cv, L), jnp.float32),
                   jax.ShapeDtypeStruct((N, H, C, 1), jnp.float32),
                   jax.ShapeDtypeStruct((N, H, C, 1), jnp.float32)),
        grid=(N, H),
        in_specs=[pl.BlockSpec(memory_space=pltpu.MemorySpace.SMEM),   # scale_h (H,)
                  pl.BlockSpec(memory_space=pltpu.MemorySpace.SMEM),   # bias_h  (H,)
                  pl.BlockSpec((1, 1, M, L), lambda b, h: (b, h, 0, 0)),
                  pl.BlockSpec((1, 1, C, M), lambda b, h: (b, h, 0, 0))],
        out_specs=(pl.BlockSpec((1, C, L), lambda b, h: (b, h, 0)),
                   pl.BlockSpec((1, 1, C, 1), lambda b, h: (b, h, 0, 0)),
                   pl.BlockSpec((1, 1, C, 1), lambda b, h: (b, h, 0, 0))),
        compiler_params=pltpu.CompilerParams(
            dimension_semantics=("parallel", "parallel")),
    )(scale_h, bias_h, logits, value)


# ---------------------------------------------------------------------------
# Kernel C: folded BN1d affine + exact (erf-based) GELU on dense (Cv, L) blocks.
# ---------------------------------------------------------------------------
def _erf(z):
    # Abramowitz & Stegun 7.1.26, |err| <= 1.5e-7.  Uses only exp / mul / add /
    # where, so it lowers on the VPU/EUP without relying on a lax.erf lowering.
    a1, a2, a3, a4, a5 = (0.254829592, -0.284496736, 1.421413741,
                          -1.453152027, 1.061405429)
    az = jnp.abs(z)
    t = 1.0 / (1.0 + 0.3275911 * az)
    poly = ((((a5 * t + a4) * t + a3) * t + a2) * t + a1) * t
    e = 1.0 - poly * jnp.exp(-az * az)
    return jnp.where(z >= 0, e, -e)


def _bn_gelu_kernel(x_ref, scale_ref, bias_ref, out_ref):
    y = x_ref[0] * scale_ref[...] + bias_ref[...]        # (Cv,L)*(Cv,1)+(Cv,1)
    out_ref[0] = 0.5 * y * (1.0 + _erf(y * _INV_SQRT2))  # exact GELU (erf)


def bn_gelu(r, scale_c, bias_c):
    N, Cv, L = r.shape
    return pl.pallas_call(
        _bn_gelu_kernel,
        out_shape=jax.ShapeDtypeStruct((N, Cv, L), jnp.float32),
        grid=(N,),
        in_specs=[pl.BlockSpec((1, Cv, L), lambda b: (b, 0, 0)),
                  pl.BlockSpec((Cv, 1), lambda b: (0, 0)),
                  pl.BlockSpec((Cv, 1), lambda b: (0, 0))],
        out_specs=pl.BlockSpec((1, Cv, L), lambda b: (b, 0, 0)),
        compiler_params=pltpu.CompilerParams(
            dimension_semantics=("parallel",)),
    )(r, scale_c, bias_c)


# ---------------------------------------------------------------------------
# Glue: Chan's parallel combine of (sum, M2) partials -> biased mean/var,
# folded into per-head / per-channel scale & bias.
# ---------------------------------------------------------------------------
def _combine_stats(block_sum, block_m2, n_per_block):
    """block_sum/block_m2: (N, K) per-block sum and sum-of-squared-deviations
    about the block mean; each block has n_per_block elements.  Returns biased
    (mean, var) of shape (K,) without E[x^2]-E[x]^2 cancellation."""
    nb = block_sum.shape[0]
    total = jnp.float32(nb * n_per_block)
    mean = jnp.sum(block_sum, axis=0) / total
    block_mean = block_sum / jnp.float32(n_per_block)
    ss = (jnp.sum(block_m2, axis=0)
          + jnp.float32(n_per_block) * jnp.sum((block_mean - mean) ** 2, axis=0))
    return mean, ss / total


@jax.jit
def attention_operation(query, key, value, gamma_sim, beta_sim, gamma_val, beta_val):
    N, H, D, L = query.shape
    M = key.shape[3]
    C = value.shape[2]
    Cv = H * C

    # One wrapper-side transpose of the (small) key tensor so the similarity
    # matmul is a standard (M,D)@(D,L) MXU op (no per-grid-step XLU transpose).
    key_md = jnp.swapaxes(key, 2, 3)                        # (N, H, M, D)

    logits, sum_a, m2_a = similarity(query, key_md)         # bf16 (N,H,M,L), f32 stats

    # BatchNorm2d (training mode, biased var, eps=1e-5) folded to scale/bias.
    mean_h, var_h = _combine_stats(sum_a.reshape(N, H), m2_a.reshape(N, H), M * L)
    scale_h = gamma_sim / jnp.sqrt(var_h + EPS)
    bias_h = beta_sim - mean_h * scale_h

    r, sum_b, m2_b = attend(scale_h, bias_h, logits, value)  # (N,Cv,L) f32

    # BatchNorm1d (training mode) folded to per-channel scale/bias.
    mean_c, var_c = _combine_stats(sum_b.reshape(N, Cv), m2_b.reshape(N, Cv), L)
    scale_c = gamma_val / jnp.sqrt(var_c + EPS)
    bias_c = beta_val - mean_c * scale_c

    # TODO(synk): PyTorch training-mode BN also updates running_mean/running_var
    # buffers; those side-effect buffers are not produced here (output is
    # unaffected).
    return bn_gelu(r, scale_c.reshape(Cv, 1), bias_c.reshape(Cv, 1))


# ---------------------------------------------------------------------------
# Pure-JAX f32 reference (mirrors the PyTorch forward).
# ---------------------------------------------------------------------------
def reference(query, key, value, gamma_sim, beta_sim, gamma_val, beta_val):
    N, H, D, L = query.shape
    C = value.shape[2]
    s = jnp.einsum("bhdl,bhdm->bhlm", query, key, precision=lax.Precision.HIGHEST)
    m = jnp.mean(s, axis=(0, 2, 3), keepdims=True)
    v = jnp.var(s, axis=(0, 2, 3), keepdims=True)
    s = (s - m) / jnp.sqrt(v + EPS) * gamma_sim.reshape(1, -1, 1, 1) \
        + beta_sim.reshape(1, -1, 1, 1)
    attn = jax.nn.softmax(s.astype(jnp.float32), axis=-1)
    r = jnp.einsum("bhlm,bhcm->bhcl", attn, value,
                   precision=lax.Precision.HIGHEST).reshape(N, H * C, L)
    m2 = jnp.mean(r, axis=(0, 2), keepdims=True)
    v2 = jnp.var(r, axis=(0, 2), keepdims=True)
    r = (r - m2) / jnp.sqrt(v2 + EPS) * gamma_val.reshape(1, -1, 1) \
        + beta_val.reshape(1, -1, 1)
    return jax.nn.gelu(r, approximate=False)


if __name__ == "__main__":
    # Small shapes: N=2 batch, H=4 heads, D=16 qk depth, L=M=16 seq, C=16 value depth
    N, H, D, L, M, C = 2, 4, 16, 16, 16, 16
    Cv = H * C  # channels_v

    key0 = jax.random.PRNGKey(0)
    kq, kk, kv = jax.random.split(key0, 3)
    query = jax.random.normal(kq, (N, H, D, L), dtype=jnp.float32)
    key_t = jax.random.normal(kk, (N, H, D, M), dtype=jnp.float32)
    value = jax.random.normal(kv, (N, H, C, M), dtype=jnp.float32)

    gamma_sim = 1.0 + 0.05 * jnp.arange(H, dtype=jnp.float32)
    beta_sim = 0.02 * jnp.arange(H, dtype=jnp.float32) - 0.03
    gamma_val = 1.0 + 0.01 * jnp.arange(Cv, dtype=jnp.float32)
    beta_val = 0.01 * (jnp.arange(Cv, dtype=jnp.float32) % 5.0)

    out = attention_operation(query, key_t, value,
                              gamma_sim, beta_sim, gamma_val, beta_val)
    out = jax.block_until_ready(out)

    ref = reference(query, key_t, value, gamma_sim, beta_sim, gamma_val, beta_val)
    assert out.shape == (N, Cv, L)
    # Tolerance reflects bf16 MXU operands / bf16 logits storage / bf16 softmax
    # weights and the approx-EUP reciprocal (f32-HIGHEST reference).
    assert jnp.allclose(out, ref, atol=4e-2, rtol=4e-2), \
        f"max abs diff {float(jnp.max(jnp.abs(out - ref)))}"

    print("KERNEL_OK")
</pallas_src>

<mosaic_0001>
module attributes {stable_mosaic.version = 11 : i64} {
  func.func @_similarity_kernel(%arg0: i32, %arg1: i32, %arg2: memref<1x1x16x16xf32, #tpu.memory_space<vmem>>, %arg3: memref<1x1x16x16xf32, #tpu.memory_space<vmem>>, %arg4: memref<1x1x16x16xbf16, #tpu.memory_space<vmem>>, %arg5: memref<1x1x1x1xf32, #tpu.memory_space<vmem>>, %arg6: memref<1x1x1x1xf32, #tpu.memory_space<vmem>>) attributes {dimension_semantics = [#tpu.dimension_semantics<parallel>, #tpu.dimension_semantics<parallel>], iteration_bounds = array<i64: 2, 4>, scalar_prefetch = 0 : i64, scratch_operands = 0 : i64, tpu.core_type = #tpu.core_type<tc>, window_params = [{transform_indices = @transform_0, window_bounds = array<i64: 1, 1, 16, 16>}, {transform_indices = @transform_1, window_bounds = array<i64: 1, 1, 16, 16>}, {transform_indices = @transform_2, window_bounds = array<i64: 1, 1, 16, 16>}, {transform_indices = @transform_3, window_bounds = array<i64: 1, 1, 1, 1>}, {transform_indices = @transform_4, window_bounds = array<i64: 1, 1, 1, 1>}]} {
    %c0 = arith.constant 0 : index
    %c0_0 = arith.constant 0 : index
    %c0_1 = arith.constant 0 : index
    %c0_2 = arith.constant 0 : index
    %0 = vector.load %arg2[%c0, %c0_0, %c0_1, %c0_2] : memref<1x1x16x16xf32, #tpu.memory_space<vmem>>, vector<1x1x16x16xf32>
    %1 = vector.shape_cast %0 : vector<1x1x16x16xf32> to vector<16x16xf32>
    %2 = arith.truncf %1 : vector<16x16xf32> to vector<16x16xbf16>
    %c0_3 = arith.constant 0 : index
    %c0_4 = arith.constant 0 : index
    %c0_5 = arith.constant 0 : index
    %c0_6 = arith.constant 0 : index
    %3 = vector.load %arg3[%c0_3, %c0_4, %c0_5, %c0_6] : memref<1x1x16x16xf32, #tpu.memory_space<vmem>>, vector<1x1x16x16xf32>
    %4 = vector.shape_cast %3 : vector<1x1x16x16xf32> to vector<16x16xf32>
    %5 = arith.truncf %4 : vector<16x16xf32> to vector<16x16xbf16>
    %cst = arith.constant dense<0.000000e+00> : vector<16x16xf32>
    %6 = tpu.matmul %5, %2, %cst {dimension_numbers = #tpu.dot_dimension_numbers<[1], [0], [0], [1], [0, 0, 1, 1], [], []>} : vector<16x16xbf16>, vector<16x16xbf16>, vector<16x16xf32> -> vector<16x16xf32>
    %7 = arith.truncf %6 : vector<16x16xf32> to vector<16x16xbf16>
    %c0_7 = arith.constant 0 : index
    %c0_8 = arith.constant 0 : index
    %c0_9 = arith.constant 0 : index
    %c0_10 = arith.constant 0 : index
    %8 = vector.load %arg4[%c0_7, %c0_8, %c0_9, %c0_10] : memref<1x1x16x16xbf16, #tpu.memory_space<vmem>>, vector<1x1x16x16xbf16>
    %9 = vector.shape_cast %8 : vector<1x1x16x16xbf16> to vector<16x16xbf16>
    %10 = vector.shape_cast %7 : vector<16x16xbf16> to vector<1x1x16x16xbf16>
    tpu.vector_store %arg4[%c0_7, %c0_8, %c0_9, %c0_10], %10 {strides = array<i32>} : memref<1x1x16x16xbf16, #tpu.memory_space<vmem>>, vector<1x1x16x16xbf16>,
    %11 = vector.shape_cast %6 : vector<16x16xf32> to vector<1x16x16xf32>
    %cst_11 = arith.constant dense<0.000000e+00> : vector<1xf32>
    %12 = vector.multi_reduction <add>, %11, %cst_11 [1, 2] : vector<1x16x16xf32> to vector<1xf32>
    %13 = vector.shape_cast %12 : vector<1xf32> to vector<1x1x1xf32>
    %14 = vector.extract %13[0, 0, 0] : f32 from vector<1x1x1xf32>
    %15 = vector.broadcast %14 : f32 to vector<1x1xf32>
    %cst_12 = arith.constant 2.560000e+02 : f32
    %16 = vector.broadcast %cst_12 : f32 to vector<1x1xf32>
    %17 = arith.divf %15, %16 : vector<1x1xf32>
    %18 = vector.broadcast %17 : vector<1x1xf32> to vector<16x16xf32>
    %19 = arith.subf %6, %18 : vector<16x16xf32>
    %20 = arith.mulf %19, %19 : vector<16x16xf32>
    %21 = vector.shape_cast %20 : vector<16x16xf32> to vector<1x16x16xf32>
    %cst_13 = arith.constant dense<0.000000e+00> : vector<1xf32>
    %22 = vector.multi_reduction <add>, %21, %cst_13 [1, 2] : vector<1x16x16xf32> to vector<1xf32>
    %23 = vector.shape_cast %22 : vector<1xf32> to vector<1x1x1xf32>
    %24 = vector.extract %23[0, 0, 0] : f32 from vector<1x1x1xf32>
    %25 = vector.broadcast %24 : f32 to vector<1x1xf32>
    %26 = vector.shape_cast %15 : vector<1x1xf32> to vector<1x1x1x1xf32>
    %c0_14 = arith.constant 0 : index
    %c0_15 = arith.constant 0 : index
    %c0_16 = arith.constant 0 : index
    %c0_17 = arith.constant 0 : index
    %27 = vector.load %arg5[%c0_14, %c0_15, %c0_16, %c0_17] : memref<1x1x1x1xf32, #tpu.memory_space<vmem>>, vector<1x1x1x1xf32>
    tpu.vector_store %arg5[%c0_14, %c0_15, %c0_16, %c0_17], %26 {strides = array<i32>} : memref<1x1x1x1xf32, #tpu.memory_space<vmem>>, vector<1x1x1x1xf32>,
    %28 = vector.shape_cast %25 : vector<1x1xf32> to vector<1x1x1x1xf32>
    %c0_18 = arith.constant 0 : index
    %c0_19 = arith.constant 0 : index
    %c0_20 = arith.constant 0 : index
    %c0_21 = arith.constant 0 : index
    %29 = vector.load %arg6[%c0_18, %c0_19, %c0_20, %c0_21] : memref<1x1x1x1xf32, #tpu.memory_space<vmem>>, vector<1x1x1x1xf32>
    tpu.vector_store %arg6[%c0_18, %c0_19, %c0_20, %c0_21], %28 {strides = array<i32>} : memref<1x1x1x1xf32, #tpu.memory_space<vmem>>, vector<1x1x1x1xf32>,
    return
  }
  func.func @transform_0(%arg0: i32, %arg1: i32) -> (i32, i32, i32, i32) {
    %c0_i32 = arith.constant 0 : i32
    %c0_i32_0 = arith.constant 0 : i32
    %c0_i32_1 = arith.constant 0 : i32
    return %arg0, %arg1, %c0_i32, %c0_i32_0 : i32, i32, i32, i32
  }
  func.func @transform_1(%arg0: i32, %arg1: i32) -> (i32, i32, i32, i32) {
    %c0_i32 = arith.constant 0 : i32
    %c0_i32_0 = arith.constant 0 : i32
    %c0_i32_1 = arith.constant 0 : i32
    return %arg0, %arg1, %c0_i32, %c0_i32_0 : i32, i32, i32, i32
  }
  func.func @transform_2(%arg0: i32, %arg1: i32) -> (i32, i32, i32, i32) {
    %c0_i32 = arith.constant 0 : i32
    %c0_i32_0 = arith.constant 0 : i32
    %c0_i32_1 = arith.constant 0 : i32
    return %arg0, %arg1, %c0_i32, %c0_i32_0 : i32, i32, i32, i32
  }
  func.func @transform_3(%arg0: i32, %arg1: i32) -> (i32, i32, i32, i32) {
    %c0_i32 = arith.constant 0 : i32
    %c0_i32_0 = arith.constant 0 : i32
    %c0_i32_1 = arith.constant 0 : i32
    return %arg0, %arg1, %c0_i32, %c0_i32_0 : i32, i32, i32, i32
  }
  func.func @transform_4(%arg0: i32, %arg1: i32) -> (i32, i32, i32, i32) {
    %c0_i32 = arith.constant 0 : i32
    %c0_i32_0 = arith.constant 0 : i32
    %c0_i32_1 = arith.constant 0 : i32
    return %arg0, %arg1, %c0_i32, %c0_i32_0 : i32, i32, i32, i32
  }
}

module attributes {stable_mosaic.version = 11 : i64} {
  func.func @_attend_kernel(%arg0: i32, %arg1: i32, %arg2: memref<4xf32, #tpu.memory_space<smem>>, %arg3: memref<4xf32, #tpu.memory_space<smem>>, %arg4: memref<1x1x16x16xbf16, #tpu.memory_space<vmem>>, %arg5: memref<1x1x16x16xf32, #tpu.memory_space<vmem>>, %arg6: memref<1x16x16xf32, #tpu.memory_space<vmem>>, %arg7: memref<1x1x16x1xf32, #tpu.memory_space<vmem>>, %arg8: memref<1x1x16x1xf32, #tpu.memory_space<vmem>>) attributes {dimension_semantics = [#tpu.dimension_semantics<parallel>, #tpu.dimension_semantics<parallel>], iteration_bounds = array<i64: 2, 4>, scalar_prefetch = 0 : i64, scratch_operands = 0 : i64, tpu.core_type = #tpu.core_type<tc>, window_params = [{transform_indices = @transform_0, window_bounds = array<i64: 4>}, {transform_indices = @transform_1, window_bounds = array<i64: 4>}, {transform_indices = @transform_2, window_bounds = array<i64: 1, 1, 16, 16>}, {transform_indices = @transform_3, window_bounds = array<i64: 1, 1, 16, 16>}, {transform_indices = @transform_4, window_bounds = array<i64: 1, 16, 16>}, {transform_indices = @transform_5, window_bounds = array<i64: 1, 1, 16, 1>}, {transform_indices = @transform_6, window_bounds = array<i64: 1, 1, 16, 1>}]} {
    %0 = arith.index_cast %arg1 : i32 to index
    %1 = memref.load %arg2[%0] : memref<4xf32, #tpu.memory_space<smem>>
    %2 = arith.index_cast %arg1 : i32 to index
    %3 = memref.load %arg3[%2] : memref<4xf32, #tpu.memory_space<smem>>
    %c0 = arith.constant 0 : index
    %c0_0 = arith.constant 0 : index
    %c0_1 = arith.constant 0 : index
    %c0_2 = arith.constant 0 : index
    %4 = vector.load %arg4[%c0, %c0_0, %c0_1, %c0_2] : memref<1x1x16x16xbf16, #tpu.memory_space<vmem>>, vector<1x1x16x16xbf16>
    %5 = vector.shape_cast %4 : vector<1x1x16x16xbf16> to vector<16x16xbf16>
    %6 = arith.extf %5 : vector<16x16xbf16> to vector<16x16xf32>
    %7 = vector.broadcast %1 : f32 to vector<16x16xf32>
    %8 = arith.mulf %6, %7 : vector<16x16xf32>
    %9 = vector.broadcast %3 : f32 to vector<16x16xf32>
    %10 = arith.addf %8, %9 : vector<16x16xf32>
    %cst = arith.constant dense<0xFF800000> : vector<16xf32>
    %11 = vector.multi_reduction <maximumf>, %10, %cst [0] : vector<16x16xf32> to vector<16xf32>
    %12 = vector.shape_cast %11 : vector<16xf32> to vector<1x16xf32>
    %13 = vector.broadcast %12 : vector<1x16xf32> to vector<16x16xf32>
    %14 = arith.subf %10, %13 : vector<16x16xf32>
    %15 = math.exp %14 : vector<16x16xf32>
    %cst_3 = arith.constant dense<0.000000e+00> : vector<16xf32>
    %16 = vector.multi_reduction <add>, %15, %cst_3 [0] : vector<16x16xf32> to vector<16xf32>
    %17 = vector.shape_cast %16 : vector<16xf32> to vector<1x16xf32>
    %18 = tpu.reciprocal %17 {approx = true} : vector<1x16xf32> -> vector<1x16xf32>
    %19 = vector.broadcast %18 : vector<1x16xf32> to vector<16x16xf32>
    %20 = arith.mulf %15, %19 : vector<16x16xf32>
    %c0_4 = arith.constant 0 : index
    %c0_5 = arith.constant 0 : index
    %c0_6 = arith.constant 0 : index
    %c0_7 = arith.constant 0 : index
    %21 = vector.load %arg5[%c0_4, %c0_5, %c0_6, %c0_7] : memref<1x1x16x16xf32, #tpu.memory_space<vmem>>, vector<1x1x16x16xf32>
    %22 = vector.shape_cast %21 : vector<1x1x16x16xf32> to vector<16x16xf32>
    %23 = arith.truncf %22 : vector<16x16xf32> to vector<16x16xbf16>
    %24 = arith.truncf %20 : vector<16x16xf32> to vector<16x16xbf16>
    %cst_8 = arith.constant dense<0.000000e+00> : vector<16x16xf32>
    %25 = tpu.matmul %23, %24, %cst_8 {dimension_numbers = #tpu.dot_dimension_numbers<[1], [0], [0], [1], [0, 0, 1, 1], [], []>} : vector<16x16xbf16>, vector<16x16xbf16>, vector<16x16xf32> -> vector<16x16xf32>
    %c0_9 = arith.constant 0 : index
    %c0_10 = arith.constant 0 : index
    %c0_11 = arith.constant 0 : index
    %26 = vector.load %arg6[%c0_9, %c0_10, %c0_11] : memref<1x16x16xf32, #tpu.memory_space<vmem>>, vector<1x16x16xf32>
    %27 = vector.shape_cast %26 : vector<1x16x16xf32> to vector<16x16xf32>
    %28 = vector.shape_cast %25 : vector<16x16xf32> to vector<1x16x16xf32>
    tpu.vector_store %arg6[%c0_9, %c0_10, %c0_11], %28 {strides = array<i32>} : memref<1x16x16xf32, #tpu.memory_space<vmem>>, vector<1x16x16xf32>,
    %cst_12 = arith.constant dense<0.000000e+00> : vector<16xf32>
    %29 = vector.multi_reduction <add>, %25, %cst_12 [1] : vector<16x16xf32> to vector<16xf32>
    %30 = vector.shape_cast %29 : vector<16xf32> to vector<16x1xf32>
    %cst_13 = arith.constant 1.600000e+01 : f32
    %31 = vector.broadcast %cst_13 : f32 to vector<16x1xf32>
    %32 = arith.divf %30, %31 : vector<16x1xf32>
    %33 = vector.broadcast %32 : vector<16x1xf32> to vector<16x16xf32>
    %34 = arith.subf %25, %33 : vector<16x16xf32>
    %35 = arith.mulf %34, %34 : vector<16x16xf32>
    %cst_14 = arith.constant dense<0.000000e+00> : vector<16xf32>
    %36 = vector.multi_reduction <add>, %35, %cst_14 [1] : vector<16x16xf32> to vector<16xf32>
    %37 = vector.shape_cast %36 : vector<16xf32> to vector<16x1xf32>
    %38 = vector.shape_cast %30 : vector<16x1xf32> to vector<1x1x16x1xf32>
    %c0_15 = arith.constant 0 : index
    %c0_16 = arith.constant 0 : index
    %c0_17 = arith.constant 0 : index
    %c0_18 = arith.constant 0 : index
    %39 = vector.load %arg7[%c0_15, %c0_16, %c0_17, %c0_18] : memref<1x1x16x1xf32, #tpu.memory_space<vmem>>, vector<1x1x16x1xf32>
    tpu.vector_store %arg7[%c0_15, %c0_16, %c0_17, %c0_18], %38 {strides = array<i32>} : memref<1x1x16x1xf32, #tpu.memory_space<vmem>>, vector<1x1x16x1xf32>,
    %40 = vector.shape_cast %37 : vector<16x1xf32> to vector<1x1x16x1xf32>
    %c0_19 = arith.constant 0 : index
    %c0_20 = arith.constant 0 : index
    %c0_21 = arith.constant 0 : index
    %c0_22 = arith.constant 0 : index
    %41 = vector.load %arg8[%c0_19, %c0_20, %c0_21, %c0_22] : memref<1x1x16x1xf32, #tpu.memory_space<vmem>>, vector<1x1x16x1xf32>
    tpu.vector_store %arg8[%c0_19, %c0_20, %c0_21, %c0_22], %40 {strides = array<i32>} : memref<1x1x16x1xf32, #tpu.memory_space<vmem>>, vector<1x1x16x1xf32>,
    return
  }
  func.func @transform_0(%arg0: i32, %arg1: i32) -> i32 {
    %c0_i32 = arith.constant 0 : i32
    %c0_i32_0 = arith.constant 0 : i32
    return %c0_i32 : i32
  }
  func.func @transform_1(%arg0: i32, %arg1: i32) -> i32 {
    %c0_i32 = arith.constant 0 : i32
    %c0_i32_0 = arith.constant 0 : i32
    return %c0_i32 : i32
  }
  func.func @transform_2(%arg0: i32, %arg1: i32) -> (i32, i32, i32, i32) {
    %c0_i32 = arith.constant 0 : i32
    %c0_i32_0 = arith.constant 0 : i32
    %c0_i32_1 = arith.constant 0 : i32
    return %arg0, %arg1, %c0_i32, %c0_i32_0 : i32, i32, i32, i32
  }
  func.func @transform_3(%arg0: i32, %arg1: i32) -> (i32, i32, i32, i32) {
    %c0_i32 = arith.constant 0 : i32
    %c0_i32_0 = arith.constant 0 : i32
    %c0_i32_1 = arith.constant 0 : i32
    return %arg0, %arg1, %c0_i32, %c0_i32_0 : i32, i32, i32, i32
  }
  func.func @transform_4(%arg0: i32, %arg1: i32) -> (i32, i32, i32) {
    %c0_i32 = arith.constant 0 : i32
    %c0_i32_0 = arith.constant 0 : i32
    return %arg0, %arg1, %c0_i32 : i32, i32, i32
  }
  func.func @transform_5(%arg0: i32, %arg1: i32) -> (i32, i32, i32, i32) {
    %c0_i32 = arith.constant 0 : i32
    %c0_i32_0 = arith.constant 0 : i32
    %c0_i32_1 = arith.constant 0 : i32
    return %arg0, %arg1, %c0_i32, %c0_i32_0 : i32, i32, i32, i32
  }
  func.func @transform_6(%arg0: i32, %arg1: i32) -> (i32, i32, i32, i32) {
    %c0_i32 = arith.constant 0 : i32
    %c0_i32_0 = arith.constant 0 : i32
    %c0_i32_1 = arith.constant 0 : i32
    return %arg0, %arg1, %c0_i32, %c0_i32_0 : i32, i32, i32, i32
  }
}

module attributes {stable_mosaic.version = 11 : i64} {
  func.func @_bn_gelu_kernel(%arg0: i32, %arg1: memref<1x64x16xf32, #tpu.memory_space<vmem>>, %arg2: memref<64x1xf32, #tpu.memory_space<vmem>>, %arg3: memref<64x1xf32, #tpu.memory_space<vmem>>, %arg4: memref<1x64x16xf32, #tpu.memory_space<vmem>>) attributes {dimension_semantics = [#tpu.dimension_semantics<parallel>], iteration_bounds = array<i64: 2>, scalar_prefetch = 0 : i64, scratch_operands = 0 : i64, tpu.core_type = #tpu.core_type<tc>, window_params = [{transform_indices = @transform_0, window_bounds = array<i64: 1, 64, 16>}, {pipeline_mode = #tpu.pipeline_mode<synchronous>, transform_indices = @transform_1, window_bounds = array<i64: 64, 1>}, {pipeline_mode = #tpu.pipeline_mode<synchronous>, transform_indices = @transform_2, window_bounds = array<i64: 64, 1>}, {transform_indices = @transform_3, window_bounds = array<i64: 1, 64, 16>}]} {
    %c0 = arith.constant 0 : index
    %c0_0 = arith.constant 0 : index
    %c0_1 = arith.constant 0 : index
    %0 = vector.load %arg1[%c0, %c0_0, %c0_1] : memref<1x64x16xf32, #tpu.memory_space<vmem>>, vector<1x64x16xf32>
    %1 = vector.shape_cast %0 : vector<1x64x16xf32> to vector<64x16xf32>
    %c0_2 = arith.constant 0 : index
    %c0_3 = arith.constant 0 : index
    %2 = vector.load %arg2[%c0_2, %c0_3] : memref<64x1xf32, #tpu.memory_space<vmem>>, vector<64x1xf32>
    %3 = vector.broadcast %2 : vector<64x1xf32> to vector<64x16xf32>
    %4 = arith.mulf %1, %3 : vector<64x16xf32>
    %c0_4 = arith.constant 0 : index
    %c0_5 = arith.constant 0 : index
    %5 = vector.load %arg3[%c0_4, %c0_5] : memref<64x1xf32, #tpu.memory_space<vmem>>, vector<64x1xf32>
    %6 = vector.broadcast %5 : vector<64x1xf32> to vector<64x16xf32>
    %7 = arith.addf %4, %6 : vector<64x16xf32>
    %cst = arith.constant 5.000000e-01 : f32
    %8 = vector.broadcast %cst : f32 to vector<64x16xf32>
    %9 = arith.mulf %8, %7 : vector<64x16xf32>
    %cst_6 = arith.constant 0.707106769 : f32
    %10 = vector.broadcast %cst_6 : f32 to vector<64x16xf32>
    %11 = arith.mulf %7, %10 : vector<64x16xf32>
    %12 = math.absf %11 : vector<64x16xf32>
    %cst_7 = arith.constant 0.327591091 : f32
    %13 = vector.broadcast %cst_7 : f32 to vector<64x16xf32>
    %14 = arith.mulf %13, %12 : vector<64x16xf32>
    %cst_8 = arith.constant 1.000000e+00 : f32
    %15 = vector.broadcast %cst_8 : f32 to vector<64x16xf32>
    %16 = arith.addf %15, %14 : vector<64x16xf32>
    %cst_9 = arith.constant 1.000000e+00 : f32
    %17 = vector.broadcast %cst_9 : f32 to vector<64x16xf32>
    %18 = arith.divf %17, %16 : vector<64x16xf32>
    %cst_10 = arith.constant 1.06140542 : f32
    %19 = vector.broadcast %cst_10 : f32 to vector<64x16xf32>
    %20 = arith.mulf %19, %18 : vector<64x16xf32>
    %cst_11 = arith.constant -1.45315206 : f32
    %21 = vector.broadcast %cst_11 : f32 to vector<64x16xf32>
    %22 = arith.addf %20, %21 : vector<64x16xf32>
    %23 = arith.mulf %22, %18 : vector<64x16xf32>
    %cst_12 = arith.constant 1.42141378 : f32
    %24 = vector.broadcast %cst_12 : f32 to vector<64x16xf32>
    %25 = arith.addf %23, %24 : vector<64x16xf32>
    %26 = arith.mulf %25, %18 : vector<64x16xf32>
    %cst_13 = arith.constant -0.284496725 : f32
    %27 = vector.broadcast %cst_13 : f32 to vector<64x16xf32>
    %28 = arith.addf %26, %27 : vector<64x16xf32>
    %29 = arith.mulf %28, %18 : vector<64x16xf32>
    %cst_14 = arith.constant 0.254829586 : f32
    %30 = vector.broadcast %cst_14 : f32 to vector<64x16xf32>
    %31 = arith.addf %29, %30 : vector<64x16xf32>
    %32 = arith.mulf %31, %18 : vector<64x16xf32>
    %cst_15 = arith.constant 0.000000e+00 : f32
    %33 = vector.broadcast %cst_15 : f32 to vector<64x16xf32>
    %34 = arith.subf %33, %12 : vector<64x16xf32>
    %35 = arith.mulf %34, %12 : vector<64x16xf32>
    %36 = math.exp %35 : vector<64x16xf32>
    %37 = arith.mulf %32, %36 : vector<64x16xf32>
    %cst_16 = arith.constant 1.000000e+00 : f32
    %38 = vector.broadcast %cst_16 : f32 to vector<64x16xf32>
    %39 = arith.subf %38, %37 : vector<64x16xf32>
    %cst_17 = arith.constant 0.000000e+00 : f32
    %40 = vector.broadcast %cst_17 : f32 to vector<64x16xf32>
    %41 = arith.cmpf oge, %11, %40 : vector<64x16xf32>
    %cst_18 = arith.constant 0.000000e+00 : f32
    %42 = vector.broadcast %cst_18 : f32 to vector<64x16xf32>
    %43 = arith.subf %42, %39 : vector<64x16xf32>
    %44 = arith.select %41, %39, %43 : vector<64x16xi1>, vector<64x16xf32>
    %cst_19 = arith.constant 1.000000e+00 : f32
    %45 = vector.broadcast %cst_19 : f32 to vector<64x16xf32>
    %46 = arith.addf %45, %44 : vector<64x16xf32>
    %47 = arith.mulf %9, %46 : vector<64x16xf32>
    %c0_20 = arith.constant 0 : index
    %c0_21 = arith.constant 0 : index
    %c0_22 = arith.constant 0 : index
    %48 = vector.load %arg4[%c0_20, %c0_21, %c0_22] : memref<1x64x16xf32, #tpu.memory_space<vmem>>, vector<1x64x16xf32>
    %49 = vector.shape_cast %48 : vector<1x64x16xf32> to vector<64x16xf32>
    %50 = vector.shape_cast %47 : vector<64x16xf32> to vector<1x64x16xf32>
    tpu.vector_store %arg4[%c0_20, %c0_21, %c0_22], %50 {strides = array<i32>} : memref<1x64x16xf32, #tpu.memory_space<vmem>>, vector<1x64x16xf32>,
    return
  }
  func.func @transform_0(%arg0: i32) -> (i32, i32, i32) {
    %c0_i32 = arith.constant 0 : i32
    %c0_i32_0 = arith.constant 0 : i32
    %c0_i32_1 = arith.constant 0 : i32
    return %arg0, %c0_i32, %c0_i32_0 : i32, i32, i32
  }
  func.func @transform_1(%arg0: i32) -> (i32, i32) {
    %c0_i32 = arith.constant 0 : i32
    %c0_i32_0 = arith.constant 0 : i32
    %c0_i32_1 = arith.constant 0 : i32
    return %c0_i32, %c0_i32_0 : i32, i32
  }
  func.func @transform_2(%arg0: i32) -> (i32, i32) {
    %c0_i32 = arith.constant 0 : i32
    %c0_i32_0 = arith.constant 0 : i32
    %c0_i32_1 = arith.constant 0 : i32
    return %c0_i32, %c0_i32_0 : i32, i32
  }
  func.func @transform_3(%arg0: i32) -> (i32, i32, i32) {
    %c0_i32 = arith.constant 0 : i32
    %c0_i32_0 = arith.constant 0 : i32
    %c0_i32_1 = arith.constant 0 : i32
    return %arg0, %c0_i32, %c0_i32_0 : i32, i32, i32
  }
}

</mosaic_0001>

<llo_original>
// kernel: attention_operation.3
$region0: #{attention_operation.3}
  #allocation0 [shape = 'u32[]', space=smem, size = 0x4, offset = 0x4, fixed_abs, tag = 'smem constant byte address 0x4 - core index']
  #allocation1 [shape = 'u32[144,128]{1,0:T(1,128)}', space=vmem, size = 0x12000, scoped, tag = 'internal scratch']
  %s0 = inlined_call_operand.vmem [shape: f32[2,4,16,16], index: 0, kind: input, shape index: {}]
  %s1 = inlined_call_operand.vmem [shape: f32[2,4,16,16], index: 1, kind: input, shape index: {}]
  %s2 = inlined_call_operand.vmem [shape: bf16[2,4,16,16], index: 2, kind: output, shape index: {0}]
  %s3 = inlined_call_operand.vmem [shape: f32[2,4,1,1], index: 3, kind: output, shape index: {1}]
  %s4 = inlined_call_operand.vmem [shape: f32[2,4,1,1], index: 4, kind: output, shape index: {2}]
  %5 = xla_tuple %s2, %s3, %s4
  %s6 = sld [smem:[#allocation0]]
  $region57: #{attention_operation.3} parent=0
    _
  %s8 = ssub.s32 1, %s6
  %s9 = scalar_select 0, %s8, %s6
  loop: start=0, step=1, limit=10
  $region2: #{attention_operation.3} parent=0 // loop_pre_header
    _
  $region3: #{attention_operation.3} parent=0 // loop_header
    %s11 = sphi 0, %s15
    %p12 = scmp.ge.s32.totalorder %s11, 10
    %s18 = sphi 0, %s30
    %s19 = sphi 0, %s26
    %s20 = sphi 0, %s18
    %s21 = sphi 0, %s19
    %s22 = sphi 0, %s20
    %s23 = sphi 0, %s21
    %s35 = sphi 0, %s37
    %s38 = sphi 0, %s35
    %s39 = sphi 0, %s38
    %s55 = sphi 0, %s39
    %s63 = sphi 0, %s65
    %s66 = sphi 0, %s63
    %s67 = sphi 0, %s66
    %s83 = sphi 0, %s67
    %s91 = sphi 0, %s93
    %s94 = sphi 0, %s91
    %s95 = sphi 0, %s94
    %s111 = sphi 0, %s95
    %s119 = sphi 0, %s121
    %s122 = sphi 0, %s119
    %s123 = sphi 0, %s122
    %s139 = sphi 0, %s123
    %s147 = sphi 0, %s149
    %s150 = sphi 0, %s147
    %s151 = sphi 0, %s150
    %s167 = sphi 0, %s151
  $region4: #{attention_operation.3} parent=0 // loop_header_branch
    %14 = sbr.rel (%p12) target = $region8
  $region5: #{attention_operation.3} parent=0 // loop_body
    %s16 = ssub.s32 %s11, 1
    %s17 = ssub.s32 %s11, 2
    %s24 = sadd.s32 1, %s19
    %p25 = scmp.ge.s32.totalorder %s24, 4
    %s26 = scalar_select %p25, 0, %s24
    %s27 = sadd.s32 1, %s18
    %s28 = scalar_select %p25, %s27, %s18
    %p29 = scmp.ge.s32.totalorder %s28, 2
    %s30 = scalar_select %p29, 0, %s28
    %s31 = ssub.s32 %s18, %s30
    %s32 = ssub.s32 %s19, %s26
    %s33 = sor.u32 %s31, %s32
    %p34 = scmp.eq.s32.totalorder %s33, 0
    %s36 = sadd.s32 %s35, 1
    %s37 = scalar_select %p34, %s35, %s36
    %p40 = pneg %p34
    %p41 = scmp.eq.s32.totalorder %s11, 7
    %p42 = por %p40, %p41
    %p43 = scmp.ne.s32.totalorder %s35, %s38
    %p44 = scmp.eq.s32.totalorder %s11, 0
    %p45 = por %p43, %p44
    %p46 = scmp.ne.s32.totalorder %s35, %s38
    %p47 = scmp.eq.s32.totalorder %s16, 7
    %p48 = por %p46, %p47
    %p49 = scmp.ne.s32.totalorder %s38, %s39
    %p50 = scmp.eq.s32.totalorder %s16, 0
    %p51 = por %p49, %p50
    %p52 = scmp.ne.s32.totalorder %s38, %s39
    %p53 = scmp.eq.s32.totalorder %s17, 7
    %p54 = por %p52, %p53
    %p56 = scmp.ne.s32.totalorder %s39, %s55
    %p57 = scmp.eq.s32.totalorder %s17, 0
    %p58 = por %p56, %p57
    %s59 = ssub.s32 %s18, %s30
    %s60 = ssub.s32 %s19, %s26
    %s61 = sor.u32 %s59, %s60
    %p62 = scmp.eq.s32.totalorder %s61, 0
    %s64 = sadd.s32 %s63, 1
    %s65 = scalar_select %p62, %s63, %s64
    %p68 = pneg %p62
    %p69 = scmp.eq.s32.totalorder %s11, 7
    %p70 = por %p68, %p69
    %p71 = scmp.ne.s32.totalorder %s63, %s66
    %p72 = scmp.eq.s32.totalorder %s11, 0
    %p73 = por %p71, %p72
    %p74 = scmp.ne.s32.totalorder %s63, %s66
    %p75 = scmp.eq.s32.totalorder %s16, 7
    %p76 = por %p74, %p75
    %p77 = scmp.ne.s32.totalorder %s66, %s67
    %p78 = scmp.eq.s32.totalorder %s16, 0
    %p79 = por %p77, %p78
    %p80 = scmp.ne.s32.totalorder %s66, %s67
    %p81 = scmp.eq.s32.totalorder %s17, 7
    %p82 = por %p80, %p81
    %p84 = scmp.ne.s32.totalorder %s67, %s83
    %p85 = scmp.eq.s32.totalorder %s17, 0
    %p86 = por %p84, %p85
    %s87 = ssub.s32 %s18, %s30
    %s88 = ssub.s32 %s19, %s26
    %s89 = sor.u32 %s87, %s88
    %p90 = scmp.eq.s32.totalorder %s89, 0
    %s92 = sadd.s32 %s91, 1
    %s93 = scalar_select %p90, %s91, %s92
    %p96 = pneg %p90
    %p97 = scmp.eq.s32.totalorder %s11, 7
    %p98 = por %p96, %p97
    %p99 = scmp.ne.s32.totalorder %s91, %s94
    %p100 = scmp.eq.s32.totalorder %s11, 0
    %p101 = por %p99, %p100
    %p102 = scmp.ne.s32.totalorder %s91, %s94
    %p103 = scmp.eq.s32.totalorder %s16, 7
    %p104 = por %p102, %p103
    %p105 = scmp.ne.s32.totalorder %s94, %s95
    %p106 = scmp.eq.s32.totalorder %s16, 0
    %p107 = por %p105, %p106
    %p108 = scmp.ne.s32.totalorder %s94, %s95
    %p109 = scmp.eq.s32.totalorder %s17, 7
    %p110 = por %p108, %p109
    %p112 = scmp.ne.s32.totalorder %s95, %s111
    %p113 = scmp.eq.s32.totalorder %s17, 0
    %p114 = por %p112, %p113
    %s115 = ssub.s32 %s18, %s30
    %s116 = ssub.s32 %s19, %s26
    %s117 = sor.u32 %s115, %s116
    %p118 = scmp.eq.s32.totalorder %s117, 0
    %s120 = sadd.s32 %s119, 1
    %s121 = scalar_select %p118, %s119, %s120
    %p124 = pneg %p118
    %p125 = scmp.eq.s32.totalorder %s11, 7
    %p126 = por %p124, %p125
    %p127 = scmp.ne.s32.totalorder %s119, %s122
    %p128 = scmp.eq.s32.totalorder %s11, 0
    %p129 = por %p127, %p128
    %p130 = scmp.ne.s32.totalorder %s119, %s122
    %p131 = scmp.eq.s32.totalorder %s16, 7
    %p132 = por %p130, %p131
    %p133 = scmp.ne.s32.totalorder %s122, %s123
    %p134 = scmp.eq.s32.totalorder %s16, 0
    %p135 = por %p133, %p134
    %p136 = scmp.ne.s32.totalorder %s122, %s123
    %p137 = scmp.eq.s32.totalorder %s17, 7
    %p138 = por %p136, %p137
    %p140 = scmp.ne.s32.totalorder %s123, %s139
    %p141 = scmp.eq.s32.totalorder %s17, 0
    %p142 = por %p140, %p141
    %s143 = ssub.s32 %s18, %s30
    %s144 = ssub.s32 %s19, %s26
    %s145 = sor.u32 %s143, %s144
    %p146 = scmp.eq.s32.totalorder %s145, 0
    %s148 = sadd.s32 %s147, 1
    %s149 = scalar_select %p146, %s147, %s148
    %p152 = pneg %p146
    %p153 = scmp.eq.s32.totalorder %s11, 7
    %p154 = por %p152, %p153
    %p155 = scmp.ne.s32.totalorder %s147, %s150
    %p156 = scmp.eq.s32.totalorder %s11, 0
    %p157 = por %p155, %p156
    %p158 = scmp.ne.s32.totalorder %s147, %s150
    %p159 = scmp.eq.s32.totalorder %s16, 7
    %p160 = por %p158, %p159
    %p161 = scmp.ne.s32.totalorder %s150, %s151
    %p162 = scmp.eq.s32.totalorder %s16, 0
    %p163 = por %p161, %p162
    %p164 = scmp.ne.s32.totalorder %s150, %s151
    %p165 = scmp.eq.s32.totalorder %s17, 7
    %p166 = por %p164, %p165
    %p168 = scmp.ne.s32.totalorder %s151, %s167
    %p169 = scmp.eq.s32.totalorder %s17, 0
    %p170 = por %p168, %p169
    %p171 = scmp.le.s32.totalorder 1, %s11
    %p172 = scmp.lt.s32.totalorder %s11, 9
    %p173 = pnand %p171, %p172
    %p174 = pneg %p173
    // Predicated region
    $region9: #{attention_operation.3} parent=5 // pred_check
      _
    $region10: #{attention_operation.3} parent=5 // pred_check_branch
      %176 = sbr.rel (%p173) target = $region12
    $region11: #{attention_operation.3} parent=5 // pred_region
      %s177 = ssub.s32 %s11, 1
    $region12: #{attention_operation.3} parent=5 // pred_fallthru
      _
    %p178 = scmp.lt.s32.totalorder %s11, 8
    // Predicated region
    $region13: #{attention_operation.3} parent=5 // pred_check
      %p179 = pneg %p178
    $region14: #{attention_operation.3} parent=5 // pred_check_branch
      %181 = sbr.rel (%p179) target = $region16
    $region15: #{attention_operation.3} parent=5 // pred_region
      // Predicated region
      $region17: #{attention_operation.3} parent=15 // pred_check
        %p182 = pneg %p45
      $region18: #{attention_operation.3} parent=15 // pred_check_branch
        %184 = sbr.rel (%p182) target = $region20
      $region19: #{attention_operation.3} parent=15 // pred_region
        %p185 = scmp.lt.s32.totalorder %s18, 1
        %s186 = scalar_select %p185, %s18, 1
        %p187 = scmp.lt.s32.totalorder %s19, 3
        %s188 = scalar_select %p187, %s19, 3
        %s189 = smul.addr %s188, 2
        %s190 = smul.addr %s186, 8
        %s191 = sadd.s32 %s189, %s190
        %s192 = smul.addr %s191, 8
        %s193 = scalar_lea.vmem %s0, %s192
      $region20: #{attention_operation.3} parent=15 // pred_fallthru
        _
      // Predicated region
      $region21: #{attention_operation.3} parent=15 // pred_check
        %p194 = pneg %p73
      $region22: #{attention_operation.3} parent=15 // pred_check_branch
        %196 = sbr.rel (%p194) target = $region24
      $region23: #{attention_operation.3} parent=15 // pred_region
        %p197 = scmp.lt.s32.totalorder %s18, 1
        %s198 = scalar_select %p197, %s18, 1
        %p199 = scmp.lt.s32.totalorder %s19, 3
        %s200 = scalar_select %p199, %s19, 3
        %s201 = smul.addr %s200, 2
        %s202 = smul.addr %s198, 8
        %s203 = sadd.s32 %s201, %s202
        %s204 = smul.addr %s203, 8
        %s205 = scalar_lea.vmem %s1, %s204
      $region24: #{attention_operation.3} parent=15 // pred_fallthru
        _
    $region16: #{attention_operation.3} parent=5 // pred_fallthru
      _
    %p206 = scmp.le.s32.totalorder 1, %s11
    %p207 = scmp.lt.s32.totalorder %s11, 9
    %p208 = pnand %p206, %p207
    %p209 = pneg %p208
    // Predicated region
    $region25: #{attention_operation.3} parent=5 // pred_check
      _
    $region26: #{attention_operation.3} parent=5 // pred_check_branch
      %211 = sbr.rel (%p208) target = $region28
    $region27: #{attention_operation.3} parent=5 // pred_region
      %s212 = ssub.s32 %s11, 1
      %p213 = scmp.lt.s32.totalorder %s20, 1
      %s214 = scalar_select %p213, %s20, 1
      %p215 = scmp.lt.s32.totalorder %s21, 3
      %s216 = scalar_select %p215, %s21, 3
      %s217 = smul.addr %s216, 2
      %s218 = smul.addr %s214, 8
      %s219 = sadd.s32 %s217, %s218
      %s220 = smul.addr %s219, 8
      %s221 = scalar_lea.vmem %s0, %s220
      %p222 = pneg %p51
      %p223 = pneg %p48
      %p224 = scmp.lt.s32.totalorder %s20, 1
      %s225 = scalar_select %p224, %s20, 1
      %p226 = scmp.lt.s32.totalorder %s21, 3
      %s227 = scalar_select %p226, %s21, 3
      %s228 = smul.addr %s227, 2
      %s229 = smul.addr %s225, 8
      %s230 = sadd.s32 %s228, %s229
      %s231 = smul.addr %s230, 8
      %s232 = scalar_lea.vmem %s1, %s231
      %p233 = pneg %p79
      %p234 = pneg %p76
      %p235 = pneg %p107
      %p236 = pneg %p104
      %p237 = scmp.lt.s32.totalorder %s20, 1
      %s238 = scalar_select %p237, %s20, 1
      %p239 = scmp.lt.s32.totalorder %s21, 3
      %s240 = scalar_select %p239, %s21, 3
      %s241 = smul.addr %s240, 2
      %s242 = smul.addr %s238, 8
      %s243 = sadd.s32 %s241, %s242
      %s244 = smul.addr %s243, 4
      %s245 = scalar_lea.vmem %s2, %s244
      %p246 = pneg %p135
      %p247 = pneg %p132
      %p248 = scmp.lt.s32.totalorder %s20, 1
      %s249 = scalar_select %p248, %s20, 1
      %p250 = scmp.lt.s32.totalorder %s21, 3
      %s251 = scalar_select %p250, %s21, 3
      %s252 = smul.addr %s249, 4
      %s253 = sadd.s32 %s251, %s252
      %s254 = scalar_lea.vmem %s3, %s253
      %p255 = pneg %p163
      %p256 = pneg %p160
      %p257 = scmp.lt.s32.totalorder %s20, 1
      %s258 = scalar_select %p257, %s20, 1
      %p259 = scmp.lt.s32.totalorder %s21, 3
      %s260 = scalar_select %p259, %s21, 3
      %s261 = smul.addr %s258, 4
      %s262 = sadd.s32 %s260, %s261
      %s263 = scalar_lea.vmem %s4, %s262
      %p264 = scmp.lt.s32.totalorder %s20, 1
      %s265 = scalar_select %p264, %s20, 1
      %p266 = scmp.lt.s32.totalorder %s21, 3
      %s267 = scalar_select %p266, %s21, 3
      %s268 = smul.addr %s267, 2
      %s269 = smul.addr %s265, 8
      %s270 = sadd.s32 %s268, %s269
      %s271 = smul.addr %s270, 8
      %s272 = scalar_lea.vmem %s0, %s271
      %p273 = scmp.lt.s32.totalorder %s20, 1
      %s274 = scalar_select %p273, %s20, 1
      %p275 = scmp.lt.s32.totalorder %s21, 3
      %s276 = scalar_select %p275, %s21, 3
      %s277 = smul.addr %s276, 2
      %s278 = smul.addr %s274, 8
      %s279 = sadd.s32 %s277, %s278
      %s280 = smul.addr %s279, 8
      %s281 = scalar_lea.vmem %s1, %s280
      %p282 = scmp.lt.s32.totalorder %s20, 1
      %s283 = scalar_select %p282, %s20, 1
      %p284 = scmp.lt.s32.totalorder %s21, 3
      %s285 = scalar_select %p284, %s21, 3
      %s286 = smul.addr %s285, 2
      %s287 = smul.addr %s283, 8
      %s288 = sadd.s32 %s286, %s287
      %s289 = smul.addr %s288, 4
      %s290 = scalar_lea.vmem %s2, %s289
      %p291 = scmp.lt.s32.totalorder %s20, 1
      %s292 = scalar_select %p291, %s20, 1
      %p293 = scmp.lt.s32.totalorder %s21, 3
      %s294 = scalar_select %p293, %s21, 3
      %s295 = smul.addr %s292, 4
      %s296 = sadd.s32 %s294, %s295
      %s297 = scalar_lea.vmem %s3, %s296
      %p298 = scmp.lt.s32.totalorder %s20, 1
      %s299 = scalar_select %p298, %s20, 1
      %p300 = scmp.lt.s32.totalorder %s21, 3
      %s301 = scalar_select %p300, %s21, 3
      %s302 = smul.addr %s299, 4
      %s303 = sadd.s32 %s301, %s302
      %s304 = scalar_lea.vmem %s4, %s303
      %v306 = vld [vmem:[%s272] sm:$0xff]
      %v307 = vld [vmem:[%s272 + $0x8] sm:$0xff]
      %v308 = vpack.c.bf16 %v307, %v306
      %v309 = vld [vmem:[%s281] sm:$0xff]
      %v310 = vld [vmem:[%s281 + $0x8] sm:$0xff]
      %v311 = vpack.c.bf16 %v310, %v309
      %vm312 = vcmask 130048
      %v314 = vsel %vm312, %v311, 0
      %316 = vmatprep.subr.bf16.mxu0 0
      %317 = vmatpush1.bf16.msra.mxu0 %v308
      %318 = vmatprep.subr.bf16.mxu0 0
      %319 = vmatpush1.bf16.msra.mxu0 0
      %320 = vmatprep.subr.bf16.mxu0 0
      %321 = vmatpush1.bf16.msra.mxu0 0
      %322 = vmatprep.subr.bf16.mxu0 0
      %323 = vmatpush1.bf16.msra.mxu0 0
      %324 = vmatprep.subr.bf16.mxu0 0
      %325 = vmatpush1.bf16.msra.mxu0 0
      %326 = vmatprep.subr.bf16.mxu0 0
      %327 = vmatpush1.bf16.msra.mxu0 0
      %328 = vmatprep.subr.bf16.mxu0 0
      %329 = vmatpush1.bf16.msra.mxu0 0
      %330 = vmatprep.subr.bf16.mxu0 0
      %331 = vmatpush1.bf16.msra.mxu0 0
      %332 = vmatprep.subr.bf16.mxu0 0
      %333 = vmatpush1.bf16.msra.mxu0 0
      %334 = vmatprep.subr.bf16.mxu0 0
      %335 = vmatpush1.bf16.msra.mxu0 0
      %336 = vmatprep.subr.bf16.mxu0 0
      %337 = vmatpush1.bf16.msra.mxu0 0
      %338 = vmatprep.subr.bf16.mxu0 0
      %339 = vmatpush1.bf16.msra.mxu0 0
      %340 = vmatprep.subr.bf16.mxu0 0
      %341 = vmatpush1.bf16.msra.mxu0 0
      %342 = vmatprep.subr.bf16.mxu0 0
      %343 = vmatpush1.bf16.msra.mxu0 0
      %344 = vmatprep.subr.bf16.mxu0 0
      %345 = vmatpush1.bf16.msra.mxu0 0
      %346 = vmatprep.subr.bf16.mxu0 0
      %347 = vmatpush1.bf16.msra.mxu0 0
      %348 = vmatprep.mubr.bf16.mxu0 0
      %349 = vmatmul.mubr.bf16.gmra.mrb[0].mxu0 %v314
      %v350 = vpop.f32.mrb[0].mxu0
      %v351 = vadd.f32 0.0, %v350
      %v352 = vpop.f32.mrb[0].mxu0
      %v353 = vpop.f32.mrb[0].mxu0
      %v354 = vadd.f32 0.0, %v353
      %v355 = vpop.f32.mrb[0].mxu0
      %356 = vdwg.mxu0
      %v357 = vpack.c.bf16 %v354, %v351
      %v359 = vunpack.c.l.b16 %v357
      %v360 = vunpack.c.h.b16 %v357
      %v361 = vpack.c.b16 %v359, %v359
      %v362 = vpack.c.b16 %v360, %v360
      %vm365 = vcmask 125952
      %366 = vst.msk [vmem:[%s290] sm:$0xf] %vm365, %v361
      %367 = vst.msk [vmem:[%s290 + $0x4] sm:$0xf] %vm365, %v362
      %v368 = vsel %vm312, %v351, 0.0
      %v369 = vsel %vm312, %v354, 0.0
      %v370 = vadd.f32 %v368, %v369
      %371 = vadd.xlane.f32.xlu0 %v370
      %v372 = vpop.xlane.xlu0 %371
      %v373 = vrot.slane %v372, 4
      %v374 = vadd.f32 %v372, %v373
      %v375 = vrot.slane %v374, 2
      %v376 = vadd.f32 %v374, %v375
      %v377 = vrot.slane %v376, 1
      %v378 = vadd.f32 %v376, %v377
      %s379 = vtos %v378
      %v380 = vstv %s379
      %v381 = vrcp.pop 256.0
      %v382 = vmul.f32 %v380, %v381
      %v383 = vsub.f32 %v351, %v382
      %v384 = vsub.f32 %v354, %v382
      %v385 = vmul.f32 %v383, %v383
      %v386 = vmul.f32 %v384, %v384
      %v387 = vsel %vm312, %v385, 0.0
      %v388 = vsel %vm312, %v386, 0.0
      %v389 = vadd.f32 %v387, %v388
      %390 = vadd.xlane.f32.xlu0 %v389
      %v391 = vpop.xlane.xlu0 %390
      %v392 = vrot.slane %v391, 4
      %v393 = vadd.f32 %v391, %v392
      %v394 = vrot.slane %v393, 2
      %v395 = vadd.f32 %v393, %v394
      %v396 = vrot.slane %v395, 1
      %v397 = vadd.f32 %v395, %v396
      %s398 = vtos %v397
      %vm399 = vcmask 0
      %400 = vst.msk [vmem:[%s297] sm:$0x1] %vm399, %v380
      %v401 = vstv %s398
      %402 = vst.msk [vmem:[%s304] sm:$0x1] %vm399, %v401
      %p403 = scmp.lt.s32.totalorder %s20, 1
      %s404 = scalar_select %p403, %s20, 1
      %p405 = scmp.lt.s32.totalorder %s21, 3
      %s406 = scalar_select %p405, %s21, 3
      %s407 = smul.addr %s406, 2
      %s408 = smul.addr %s404, 8
      %s409 = sadd.s32 %s407, %s408
      %s410 = smul.addr %s409, 4
      %s411 = scalar_lea.vmem %s2, %s410
      %p412 = scmp.lt.s32.totalorder %s20, 1
      %s413 = scalar_select %p412, %s20, 1
      %p414 = scmp.lt.s32.totalorder %s21, 3
      %s415 = scalar_select %p414, %s21, 3
      %s416 = smul.addr %s413, 4
      %s417 = sadd.s32 %s415, %s416
      %s418 = scalar_lea.vmem %s3, %s417
      %p419 = scmp.lt.s32.totalorder %s20, 1
      %s420 = scalar_select %p419, %s20, 1
      %p421 = scmp.lt.s32.totalorder %s21, 3
      %s422 = scalar_select %p421, %s21, 3
      %s423 = smul.addr %s420, 4
      %s424 = sadd.s32 %s422, %s423
      %s425 = scalar_lea.vmem %s4, %s424
      // Predicated region
      $region29: #{attention_operation.3} parent=27 // pred_check
        %p426 = pneg %p104
      $region30: #{attention_operation.3} parent=27 // pred_check_branch
        %428 = sbr.rel (%p426) target = $region32
      $region31: #{attention_operation.3} parent=27 // pred_region
        _
      $region32: #{attention_operation.3} parent=27 // pred_fallthru
        _
      // Predicated region
      $region33: #{attention_operation.3} parent=27 // pred_check
        %p429 = pneg %p132
      $region34: #{attention_operation.3} parent=27 // pred_check_branch
        %431 = sbr.rel (%p429) target = $region36
      $region35: #{attention_operation.3} parent=27 // pred_region
        _
      $region36: #{attention_operation.3} parent=27 // pred_fallthru
        _
      // Predicated region
      $region37: #{attention_operation.3} parent=27 // pred_check
        %p432 = pneg %p160
      $region38: #{attention_operation.3} parent=27 // pred_check_branch
        %434 = sbr.rel (%p432) target = $region40
      $region39: #{attention_operation.3} parent=27 // pred_region
        _
      $region40: #{attention_operation.3} parent=27 // pred_fallthru
        _
    $region28: #{attention_operation.3} parent=5 // pred_fallthru
      _
    %p435 = scmp.le.s32.totalorder 2, %s11
    // Predicated region
    $region41: #{attention_operation.3} parent=5 // pred_check
      %p436 = pneg %p435
    $region42: #{attention_operation.3} parent=5 // pred_check_branch
      %438 = sbr.rel (%p436) target = $region44
    $region43: #{attention_operation.3} parent=5 // pred_region
      %s439 = ssub.s32 %s11, 2
      // Predicated region
      $region45: #{attention_operation.3} parent=43 // pred_check
        %p440 = pneg %p110
      $region46: #{attention_operation.3} parent=43 // pred_check_branch
        %442 = sbr.rel (%p440) target = $region48
      $region47: #{attention_operation.3} parent=43 // pred_region
        %p443 = scmp.lt.s32.totalorder %s22, 1
        %s444 = scalar_select %p443, %s22, 1
        %p445 = scmp.lt.s32.totalorder %s23, 3
        %s446 = scalar_select %p445, %s23, 3
        %s447 = smul.addr %s446, 2
        %s448 = smul.addr %s444, 8
        %s449 = sadd.s32 %s447, %s448
        %s450 = smul.addr %s449, 4
        %s451 = scalar_lea.vmem %s2, %s450
      $region48: #{attention_operation.3} parent=43 // pred_fallthru
        _
      // Predicated region
      $region49: #{attention_operation.3} parent=43 // pred_check
        %p452 = pneg %p138
      $region50: #{attention_operation.3} parent=43 // pred_check_branch
        %454 = sbr.rel (%p452) target = $region52
      $region51: #{attention_operation.3} parent=43 // pred_region
        %p455 = scmp.lt.s32.totalorder %s22, 1
        %s456 = scalar_select %p455, %s22, 1
        %p457 = scmp.lt.s32.totalorder %s23, 3
        %s458 = scalar_select %p457, %s23, 3
        %s459 = smul.addr %s456, 4
        %s460 = sadd.s32 %s458, %s459
        %s461 = scalar_lea.vmem %s3, %s460
      $region52: #{attention_operation.3} parent=43 // pred_fallthru
        _
      // Predicated region
      $region53: #{attention_operation.3} parent=43 // pred_check
        %p462 = pneg %p166
      $region54: #{attention_operation.3} parent=43 // pred_check_branch
        %464 = sbr.rel (%p462) target = $region56
      $region55: #{attention_operation.3} parent=43 // pred_region
        %p465 = scmp.lt.s32.totalorder %s22, 1
        %s466 = scalar_select %p465, %s22, 1
        %p467 = scmp.lt.s32.totalorder %s23, 3
        %s468 = scalar_select %p467, %s23, 3
        %s469 = smul.addr %s466, 4
        %s470 = sadd.s32 %s468, %s469
        %s471 = scalar_lea.vmem %s4, %s470
      $region56: #{attention_operation.3} parent=43 // pred_fallthru
        _
    $region44: #{attention_operation.3} parent=5 // pred_fallthru
      _
  $region6: #{attention_operation.3} parent=0 // loop_footer
    %s15 = sadd.s32 1, %s11
  $region7: #{attention_operation.3} parent=0 // loop_footer_branch
    %10 = sbr.rel target = $region3
  $region8: #{attention_operation.3} parent=0 // loop_exit
    _

// kernel: attention_operation.4
$region0: #{attention_operation.4}
  #allocation0 [shape = 'u32[]', space=smem, size = 0x4, offset = 0x4, fixed_abs, tag = 'smem constant byte address 0x4 - core index']
  #allocation1 [shape = 'u32[144,128]{1,0:T(1,128)}', space=vmem, size = 0x12000, scoped, tag = 'internal scratch']
  %s0 = inlined_call_operand.vmem [shape: f32[4], index: 0, kind: input, shape index: {}]
  %s1 = inlined_call_operand.vmem [shape: f32[4], index: 1, kind: input, shape index: {}]
  %s2 = inlined_call_operand.vmem [shape: bf16[2,4,16,16], index: 2, kind: input, shape index: {}]
  %s3 = inlined_call_operand.vmem [shape: f32[2,4,16,16], index: 3, kind: input, shape index: {}]
  %s4 = inlined_call_operand.vmem [shape: f32[2,64,16], index: 4, kind: output, shape index: {0}]
  %s5 = inlined_call_operand.vmem [shape: f32[2,4,16,1], index: 5, kind: output, shape index: {1}]
  %s6 = inlined_call_operand.vmem [shape: f32[2,4,16,1], index: 6, kind: output, shape index: {2}]
  %7 = xla_tuple %s4, %s5, %s6
  %s8 = sld [smem:[#allocation0]]
  $region73: #{attention_operation.4} parent=0
    _
  %s10 = ssub.s32 1, %s8
  %s11 = scalar_select 0, %s10, %s8
  $region1: #{attention_operation.4} parent=0
    #allocation2 [shape = 'u8[512]{0}', space=smem, size = 0x200, scoped, tag = 'input window, operand 0, single buffered']
    #allocation3 [shape = 's32[2]{0}', space=sflag, size = 0x8, scoped, tag = 'scoped memory for attention_operation.4']
    #allocation4 [shape = 'u8[512]{0}', space=smem, size = 0x200, scoped, tag = 'input window, operand 1, single buffered']
    #allocation5 [shape = 's32[1]{0}', space=sflag, size = 0x4, scoped, tag = 'scoped memory for attention_operation.4']
    %12 = vsyncpa [#allocation3], 0
    %13 = vsyncpa [#allocation5], 0
    loop: start=0, step=1, limit=10
    $region2: #{attention_operation.4} parent=1 // loop_pre_header
      _
    $region3: #{attention_operation.4} parent=1 // loop_header
      %s15 = sphi 0, %s19
      %p16 = scmp.ge.s32.totalorder %s15, 10
      %s22 = sphi 0, %s34
      %s23 = sphi 0, %s30
      %s24 = sphi 0, %s22
      %s25 = sphi 0, %s23
      %s26 = sphi 0, %s24
      %s27 = sphi 0, %s25
      %s35 = sphi 0, %s35
      %s37 = sphi 0, %s35
      %s38 = sphi 0, %s37
      %s52 = sphi 0, %s38
      %s56 = sphi 0, %s56
      %s58 = sphi 0, %s56
      %s59 = sphi 0, %s58
      %s73 = sphi 0, %s59
      %s81 = sphi 0, %s83
      %s84 = sphi 0, %s81
      %s85 = sphi 0, %s84
      %s101 = sphi 0, %s85
      %s109 = sphi 0, %s111
      %s112 = sphi 0, %s109
      %s113 = sphi 0, %s112
      %s129 = sphi 0, %s113
      %s137 = sphi 0, %s139
      %s140 = sphi 0, %s137
      %s141 = sphi 0, %s140
      %s157 = sphi 0, %s141
      %s165 = sphi 0, %s167
      %s168 = sphi 0, %s165
      %s169 = sphi 0, %s168
      %s185 = sphi 0, %s169
      %s193 = sphi 0, %s195
      %s196 = sphi 0, %s193
      %s197 = sphi 0, %s196
      %s213 = sphi 0, %s197
    $region4: #{attention_operation.4} parent=1 // loop_header_branch
      %18 = sbr.rel (%p16) target = $region8
    $region5: #{attention_operation.4} parent=1 // loop_body
      %s20 = ssub.s32 %s15, 1
      %s21 = ssub.s32 %s15, 2
      %s28 = sadd.s32 1, %s23
      %p29 = scmp.ge.s32.totalorder %s28, 4
      %s30 = scalar_select %p29, 0, %s28
      %s31 = sadd.s32 1, %s22
      %s32 = scalar_select %p29, %s31, %s22
      %p33 = scmp.ge.s32.totalorder %s32, 2
      %s34 = scalar_select %p33, 0, %s32
      %s36 = sadd.s32 %s35, 1
      %p39 = scmp.eq.s32.totalorder %s15, 7
      %p40 = scmp.ne.s32.totalorder %s35, %s37
      %p41 = scmp.eq.s32.totalorder %s15, 0
      %p42 = por %p40, %p41
      %p43 = scmp.ne.s32.totalorder %s35, %s37
      %p44 = scmp.eq.s32.totalorder %s20, 7
      %p45 = por %p43, %p44
      %p46 = scmp.ne.s32.totalorder %s37, %s38
      %p47 = scmp.eq.s32.totalorder %s20, 0
      %p48 = por %p46, %p47
      %p49 = scmp.ne.s32.totalorder %s37, %s38
      %p50 = scmp.eq.s32.totalorder %s21, 7
      %p51 = por %p49, %p50
      %p53 = scmp.ne.s32.totalorder %s38, %s52
      %p54 = scmp.eq.s32.totalorder %s21, 0
      %p55 = por %p53, %p54
      %s57 = sadd.s32 %s56, 1
      %p60 = scmp.eq.s32.totalorder %s15, 7
      %p61 = scmp.ne.s32.totalorder %s56, %s58
      %p62 = scmp.eq.s32.totalorder %s15, 0
      %p63 = por %p61, %p62
      %p64 = scmp.ne.s32.totalorder %s56, %s58
      %p65 = scmp.eq.s32.totalorder %s20, 7
      %p66 = por %p64, %p65
      %p67 = scmp.ne.s32.totalorder %s58, %s59
      %p68 = scmp.eq.s32.totalorder %s20, 0
      %p69 = por %p67, %p68
      %p70 = scmp.ne.s32.totalorder %s58, %s59
      %p71 = scmp.eq.s32.totalorder %s21, 7
      %p72 = por %p70, %p71
      %p74 = scmp.ne.s32.totalorder %s59, %s73
      %p75 = scmp.eq.s32.totalorder %s21, 0
      %p76 = por %p74, %p75
      %s77 = ssub.s32 %s22, %s34
      %s78 = ssub.s32 %s23, %s30
      %s79 = sor.u32 %s77, %s78
      %p80 = scmp.eq.s32.totalorder %s79, 0
      %s82 = sadd.s32 %s81, 1
      %s83 = scalar_select %p80, %s81, %s82
      %p86 = pneg %p80
      %p87 = scmp.eq.s32.totalorder %s15, 7
      %p88 = por %p86, %p87
      %p89 = scmp.ne.s32.totalorder %s81, %s84
      %p90 = scmp.eq.s32.totalorder %s15, 0
      %p91 = por %p89, %p90
      %p92 = scmp.ne.s32.totalorder %s81, %s84
      %p93 = scmp.eq.s32.totalorder %s20, 7
      %p94 = por %p92, %p93
      %p95 = scmp.ne.s32.totalorder %s84, %s85
      %p96 = scmp.eq.s32.totalorder %s20, 0
      %p97 = por %p95, %p96
      %p98 = scmp.ne.s32.totalorder %s84, %s85
      %p99 = scmp.eq.s32.totalorder %s21, 7
      %p100 = por %p98, %p99
      %p102 = scmp.ne.s32.totalorder %s85, %s101
      %p103 = scmp.eq.s32.totalorder %s21, 0
      %p104 = por %p102, %p103
      %s105 = ssub.s32 %s22, %s34
      %s106 = ssub.s32 %s23, %s30
      %s107 = sor.u32 %s105, %s106
      %p108 = scmp.eq.s32.totalorder %s107, 0
      %s110 = sadd.s32 %s109, 1
      %s111 = scalar_select %p108, %s109, %s110
      %p114 = pneg %p108
      %p115 = scmp.eq.s32.totalorder %s15, 7
      %p116 = por %p114, %p115
      %p117 = scmp.ne.s32.totalorder %s109, %s112
      %p118 = scmp.eq.s32.totalorder %s15, 0
      %p119 = por %p117, %p118
      %p120 = scmp.ne.s32.totalorder %s109, %s112
      %p121 = scmp.eq.s32.totalorder %s20, 7
      %p122 = por %p120, %p121
      %p123 = scmp.ne.s32.totalorder %s112, %s113
      %p124 = scmp.eq.s32.totalorder %s20, 0
      %p125 = por %p123, %p124
      %p126 = scmp.ne.s32.totalorder %s112, %s113
      %p127 = scmp.eq.s32.totalorder %s21, 7
      %p128 = por %p126, %p127
      %p130 = scmp.ne.s32.totalorder %s113, %s129
      %p131 = scmp.eq.s32.totalorder %s21, 0
      %p132 = por %p130, %p131
      %s133 = ssub.s32 %s22, %s34
      %s134 = ssub.s32 %s23, %s30
      %s135 = sor.u32 %s133, %s134
      %p136 = scmp.eq.s32.totalorder %s135, 0
      %s138 = sadd.s32 %s137, 1
      %s139 = scalar_select %p136, %s137, %s138
      %p142 = pneg %p136
      %p143 = scmp.eq.s32.totalorder %s15, 7
      %p144 = por %p142, %p143
      %p145 = scmp.ne.s32.totalorder %s137, %s140
      %p146 = scmp.eq.s32.totalorder %s15, 0
      %p147 = por %p145, %p146
      %p148 = scmp.ne.s32.totalorder %s137, %s140
      %p149 = scmp.eq.s32.totalorder %s20, 7
      %p150 = por %p148, %p149
      %p151 = scmp.ne.s32.totalorder %s140, %s141
      %p152 = scmp.eq.s32.totalorder %s20, 0
      %p153 = por %p151, %p152
      %p154 = scmp.ne.s32.totalorder %s140, %s141
      %p155 = scmp.eq.s32.totalorder %s21, 7
      %p156 = por %p154, %p155
      %p158 = scmp.ne.s32.totalorder %s141, %s157
      %p159 = scmp.eq.s32.totalorder %s21, 0
      %p160 = por %p158, %p159
      %s161 = ssub.s32 %s22, %s34
      %s162 = ssub.s32 %s23, %s30
      %s163 = sor.u32 %s161, %s162
      %p164 = scmp.eq.s32.totalorder %s163, 0
      %s166 = sadd.s32 %s165, 1
      %s167 = scalar_select %p164, %s165, %s166
      %p170 = pneg %p164
      %p171 = scmp.eq.s32.totalorder %s15, 7
      %p172 = por %p170, %p171
      %p173 = scmp.ne.s32.totalorder %s165, %s168
      %p174 = scmp.eq.s32.totalorder %s15, 0
      %p175 = por %p173, %p174
      %p176 = scmp.ne.s32.totalorder %s165, %s168
      %p177 = scmp.eq.s32.totalorder %s20, 7
      %p178 = por %p176, %p177
      %p179 = scmp.ne.s32.totalorder %s168, %s169
      %p180 = scmp.eq.s32.totalorder %s20, 0
      %p181 = por %p179, %p180
      %p182 = scmp.ne.s32.totalorder %s168, %s169
      %p183 = scmp.eq.s32.totalorder %s21, 7
      %p184 = por %p182, %p183
      %p186 = scmp.ne.s32.totalorder %s169, %s185
      %p187 = scmp.eq.s32.totalorder %s21, 0
      %p188 = por %p186, %p187
      %s189 = ssub.s32 %s22, %s34
      %s190 = ssub.s32 %s23, %s30
      %s191 = sor.u32 %s189, %s190
      %p192 = scmp.eq.s32.totalorder %s191, 0
      %s194 = sadd.s32 %s193, 1
      %s195 = scalar_select %p192, %s193, %s194
      %p198 = pneg %p192
      %p199 = scmp.eq.s32.totalorder %s15, 7
      %p200 = por %p198, %p199
      %p201 = scmp.ne.s32.totalorder %s193, %s196
      %p202 = scmp.eq.s32.totalorder %s15, 0
      %p203 = por %p201, %p202
      %p204 = scmp.ne.s32.totalorder %s193, %s196
      %p205 = scmp.eq.s32.totalorder %s20, 7
      %p206 = por %p204, %p205
      %p207 = scmp.ne.s32.totalorder %s196, %s197
      %p208 = scmp.eq.s32.totalorder %s20, 0
      %p209 = por %p207, %p208
      %p210 = scmp.ne.s32.totalorder %s196, %s197
      %p211 = scmp.eq.s32.totalorder %s21, 7
      %p212 = por %p210, %p211
      %p214 = scmp.ne.s32.totalorder %s197, %s213
      %p215 = scmp.eq.s32.totalorder %s21, 0
      %p216 = por %p214, %p215
      %p217 = scmp.le.s32.totalorder 1, %s15
      %p218 = scmp.lt.s32.totalorder %s15, 9
      %p219 = pnand %p217, %p218
      %p220 = pneg %p219
      // Predicated region
      $region9: #{attention_operation.4} parent=5 // pred_check
        _
      $region10: #{attention_operation.4} parent=5 // pred_check_branch
        %222 = sbr.rel (%p219) target = $region12
      $region11: #{attention_operation.4} parent=5 // pred_region
        %s223 = ssub.s32 %s15, 1
        // Predicated region
        $region13: #{attention_operation.4} parent=11 // pred_check
          %p224 = pneg %p48
        $region14: #{attention_operation.4} parent=11 // pred_check_branch
          %226 = sbr.rel (%p224) target = $region16
        $region15: #{attention_operation.4} parent=11 // pred_region
          %s228 = ssub.s32 16, 16
          %229 = vsyncadd [#allocation3], %s228
          %s231 = sshll.u32 %s0, 4
          %s232 = int_to_ptr.vmem [resolvable:$true] %s231
          %234 = dma.vmem_to_smem %s232, 16, [#allocation2], [#allocation3]
        $region16: #{attention_operation.4} parent=11 // pred_fallthru
          _
        // Predicated region
        $region17: #{attention_operation.4} parent=11 // pred_check
          %p235 = pneg %p69
        $region18: #{attention_operation.4} parent=11 // pred_check_branch
          %237 = sbr.rel (%p235) target = $region20
        $region19: #{attention_operation.4} parent=11 // pred_region
          %s239 = ssub.s32 16, 16
          %240 = vsyncadd [#allocation5], %s239
          %s242 = sshll.u32 %s1, 4
          %s243 = int_to_ptr.vmem [resolvable:$true] %s242
          %245 = dma.vmem_to_smem %s243, 16, [#allocation4], [#allocation5]
        $region20: #{attention_operation.4} parent=11 // pred_fallthru
          _
      $region12: #{attention_operation.4} parent=5 // pred_fallthru
        _
      %p246 = scmp.lt.s32.totalorder %s15, 8
      // Predicated region
      $region21: #{attention_operation.4} parent=5 // pred_check
        %p247 = pneg %p246
      $region22: #{attention_operation.4} parent=5 // pred_check_branch
        %249 = sbr.rel (%p247) target = $region24
      $region23: #{attention_operation.4} parent=5 // pred_region
        // Predicated region
        $region25: #{attention_operation.4} parent=23 // pred_check
          %p250 = pneg %p91
        $region26: #{attention_operation.4} parent=23 // pred_check_branch
          %252 = sbr.rel (%p250) target = $region28
        $region27: #{attention_operation.4} parent=23 // pred_region
          %p253 = scmp.lt.s32.totalorder %s22, 1
          %s254 = scalar_select %p253, %s22, 1
          %p255 = scmp.lt.s32.totalorder %s23, 3
          %s256 = scalar_select %p255, %s23, 3
          %s257 = smul.addr %s256, 2
          %s258 = smul.addr %s254, 8
          %s259 = sadd.s32 %s257, %s258
          %s260 = smul.addr %s259, 4
          %s261 = scalar_lea.vmem %s2, %s260
        $region28: #{attention_operation.4} parent=23 // pred_fallthru
          _
        // Predicated region
        $region29: #{attention_operation.4} parent=23 // pred_check
          %p262 = pneg %p119
        $region30: #{attention_operation.4} parent=23 // pred_check_branch
          %264 = sbr.rel (%p262) target = $region32
        $region31: #{attention_operation.4} parent=23 // pred_region
          %p265 = scmp.lt.s32.totalorder %s22, 1
          %s266 = scalar_select %p265, %s22, 1
          %p267 = scmp.lt.s32.totalorder %s23, 3
          %s268 = scalar_select %p267, %s23, 3
          %s269 = smul.addr %s268, 2
          %s270 = smul.addr %s266, 8
          %s271 = sadd.s32 %s269, %s270
          %s272 = smul.addr %s271, 8
          %s273 = scalar_lea.vmem %s3, %s272
        $region32: #{attention_operation.4} parent=23 // pred_fallthru
          _
      $region24: #{attention_operation.4} parent=5 // pred_fallthru
        _
      %p274 = scmp.le.s32.totalorder 1, %s15
      %p275 = scmp.lt.s32.totalorder %s15, 9
      %p276 = pnand %p274, %p275
      %p277 = pneg %p276
      // Predicated region
      $region33: #{attention_operation.4} parent=5 // pred_check
        _
      $region34: #{attention_operation.4} parent=5 // pred_check_branch
        %279 = sbr.rel (%p276) target = $region36
      $region35: #{attention_operation.4} parent=5 // pred_region
        %s280 = ssub.s32 %s15, 1
        // Predicated region
        $region37: #{attention_operation.4} parent=35 // pred_check
          %p281 = pneg %p48
        $region38: #{attention_operation.4} parent=35 // pred_check_branch
          %283 = sbr.rel (%p281) target = $region40
        $region39: #{attention_operation.4} parent=35 // pred_region
          %284 = dma.done [#allocation3], 16
        $region40: #{attention_operation.4} parent=35 // pred_fallthru
          _
        // Predicated region
        $region41: #{attention_operation.4} parent=35 // pred_check
          %p285 = pneg %p69
        $region42: #{attention_operation.4} parent=35 // pred_check_branch
          %287 = sbr.rel (%p285) target = $region44
        $region43: #{attention_operation.4} parent=35 // pred_region
          %288 = dma.done [#allocation5], 16
        $region44: #{attention_operation.4} parent=35 // pred_fallthru
          _
        %289 = sfence
        %p290 = pneg %p48
        %p291 = pneg %p45
        %p292 = pneg %p69
        %p293 = pneg %p66
        %p294 = scmp.lt.s32.totalorder %s24, 1
        %s295 = scalar_select %p294, %s24, 1
        %p296 = scmp.lt.s32.totalorder %s25, 3
        %s297 = scalar_select %p296, %s25, 3
        %s298 = smul.addr %s297, 2
        %s299 = smul.addr %s295, 8
        %s300 = sadd.s32 %s298, %s299
        %s301 = smul.addr %s300, 4
        %s302 = scalar_lea.vmem %s2, %s301
        %p303 = pneg %p97
        %p304 = pneg %p94
        %p305 = scmp.lt.s32.totalorder %s24, 1
        %s306 = scalar_select %p305, %s24, 1
        %p307 = scmp.lt.s32.totalorder %s25, 3
        %s308 = scalar_select %p307, %s25, 3
        %s309 = smul.addr %s308, 2
        %s310 = smul.addr %s306, 8
        %s311 = sadd.s32 %s309, %s310
        %s312 = smul.addr %s311, 8
        %s313 = scalar_lea.vmem %s3, %s312
        %p314 = pneg %p125
        %p315 = pneg %p122
        %p316 = pneg %p153
        %p317 = pneg %p150
        %s318 = smul.u32 2, %s25
        %p319 = scmp.lt.s32.totalorder %s24, 1
        %s320 = scalar_select %p319, %s24, 1
        %p321 = scmp.lt.s32.totalorder %s318, 7
        %s322 = scalar_select %p321, %s318, 7
        %s323 = smul.addr %s320, 8
        %s324 = sadd.s32 %s322, %s323
        %s325 = smul.addr %s324, 8
        %s326 = scalar_lea.vmem %s4, %s325
        %p327 = pneg %p181
        %p328 = pneg %p178
        %p329 = scmp.lt.s32.totalorder %s24, 1
        %s330 = scalar_select %p329, %s24, 1
        %p331 = scmp.lt.s32.totalorder %s25, 3
        %s332 = scalar_select %p331, %s25, 3
        %s333 = smul.addr %s332, 2
        %s334 = smul.addr %s330, 8
        %s335 = sadd.s32 %s333, %s334
        %s336 = smul.addr %s335, 8
        %s337 = scalar_lea.vmem %s5, %s336
        %p338 = pneg %p209
        %p339 = pneg %p206
        %p340 = scmp.lt.s32.totalorder %s24, 1
        %s341 = scalar_select %p340, %s24, 1
        %p342 = scmp.lt.s32.totalorder %s25, 3
        %s343 = scalar_select %p342, %s25, 3
        %s344 = smul.addr %s343, 2
        %s345 = smul.addr %s341, 8
        %s346 = sadd.s32 %s344, %s345
        %s347 = smul.addr %s346, 8
        %s348 = scalar_lea.vmem %s6, %s347
        %p349 = scmp.lt.s32.totalorder %s24, 1
        %s350 = scalar_select %p349, %s24, 1
        %p351 = scmp.lt.s32.totalorder %s25, 3
        %s352 = scalar_select %p351, %s25, 3
        %s353 = smul.addr %s352, 2
        %s354 = smul.addr %s350, 8
        %s355 = sadd.s32 %s353, %s354
        %s356 = smul.addr %s355, 4
        %s357 = scalar_lea.vmem %s2, %s356
        %p358 = scmp.lt.s32.totalorder %s24, 1
        %s359 = scalar_select %p358, %s24, 1
        %p360 = scmp.lt.s32.totalorder %s25, 3
        %s361 = scalar_select %p360, %s25, 3
        %s362 = smul.addr %s361, 2
        %s363 = smul.addr %s359, 8
        %s364 = sadd.s32 %s362, %s363
        %s365 = smul.addr %s364, 8
        %s366 = scalar_lea.vmem %s3, %s365
        %s367 = smul.u32 2, %s25
        %p368 = scmp.lt.s32.totalorder %s24, 1
        %s369 = scalar_select %p368, %s24, 1
        %p370 = scmp.lt.s32.totalorder %s367, 7
        %s371 = scalar_select %p370, %s367, 7
        %s372 = smul.addr %s369, 8
        %s373 = sadd.s32 %s371, %s372
        %s374 = smul.addr %s373, 8
        %s375 = scalar_lea.vmem %s4, %s374
        %s376 = smul.u32 2, %s25
        %p377 = scmp.lt.s32.totalorder %s24, 1
        %s378 = scalar_select %p377, %s24, 1
        %p379 = scmp.lt.s32.totalorder %s25, 3
        %s380 = scalar_select %p379, %s25, 3
        %s381 = smul.addr %s380, 2
        %s382 = smul.addr %s378, 8
        %s383 = sadd.s32 %s381, %s382
        %s384 = smul.addr %s383, 8
        %s385 = scalar_lea.vmem %s5, %s384
        %p386 = scmp.lt.s32.totalorder %s24, 1
        %s387 = scalar_select %p386, %s24, 1
        %p388 = scmp.lt.s32.totalorder %s25, 3
        %s389 = scalar_select %p388, %s25, 3
        %s390 = smul.addr %s389, 2
        %s391 = smul.addr %s387, 8
        %s392 = sadd.s32 %s390, %s391
        %s393 = smul.addr %s392, 8
        %s394 = scalar_lea.vmem %s6, %s393
        %s396 = sld [smem:[#allocation2 + %s25]]
        %s397 = sld [smem:[#allocation4 + %s25]]
        %v398 = vld [vmem:[%s357] sm:$0xf]
        %v399 = vld [vmem:[%s357 + $0x4] sm:$0xf]
        %v400 = vunpack.c.l.bf16 %v398
        %v401 = vunpack.c.l.bf16 %v399
        %v402 = vstv %s396
        %v403 = vmul.f32 %v400, %v402
        %v404 = vmul.f32 %v401, %v402
        %v405 = vstv %s397
        %v406 = vadd.f32 %v403, %v405
        %v407 = vadd.f32 %v404, %v405
        %vm408 = vcmask 130048
        %v409 = vsel %vm408, %v406, -inf
        %v410 = vsel %vm408, %v407, -inf
        %v411 = vmax.f32 %v409, %v410
        %v412 = vrot.slane %v411, 4
        %v413 = vmax.f32 %v411, %v412
        %v414 = vrot.slane %v413, 2
        %v415 = vmax.f32 %v413, %v414
        %v416 = vrot.slane %v415, 1
        %v417 = vmax.f32 %v415, %v416
        %v418 = vsub.f32 %v406, %v417
        %v419 = vsub.f32 %v407, %v417
        %v420 = vmul.f32 %v418, 1.442695
        %v421 = vpow.pop %v420
        %v422 = vmul.f32 %v419, 1.442695
        %v423 = vpow.pop %v422
        %v424 = vsel %vm408, %v421, 0.0
        %v425 = vsel %vm408, %v423, 0.0
        %v426 = vadd.f32 %v424, %v425
        %v427 = vrot.slane %v426, 4
        %v428 = vadd.f32 %v426, %v427
        %v429 = vrot.slane %v428, 2
        %v430 = vadd.f32 %v428, %v429
        %v431 = vrot.slane %v430, 1
        %v432 = vadd.f32 %v430, %v431
        %v433 = vrcp.pop %v432
        %v434 = vmul.f32 %v421, %v433
        %v435 = vmul.f32 %v423, %v433
        %v436 = vld [vmem:[%s366] sm:$0xff]
        %v437 = vld [vmem:[%s366 + $0x8] sm:$0xff]
        %v438 = vpack.c.bf16 %v437, %v436
        %v439 = vpack.c.bf16 %v435, %v434
        %v441 = vsel %vm408, %v438, 0
        %443 = vmatprep.subr.bf16.mxu0 0
        %444 = vmatpush1.bf16.msra.mxu0 %v439
        %445 = vmatprep.subr.bf16.mxu0 0
        %446 = vmatpush1.bf16.msra.mxu0 0
        %447 = vmatprep.subr.bf16.mxu0 0
        %448 = vmatpush1.bf16.msra.mxu0 0
        %449 = vmatprep.subr.bf16.mxu0 0
        %450 = vmatpush1.bf16.msra.mxu0 0
        %451 = vmatprep.subr.bf16.mxu0 0
        %452 = vmatpush1.bf16.msra.mxu0 0
        %453 = vmatprep.subr.bf16.mxu0 0
        %454 = vmatpush1.bf16.msra.mxu0 0
        %455 = vmatprep.subr.bf16.mxu0 0
        %456 = vmatpush1.bf16.msra.mxu0 0
        %457 = vmatprep.subr.bf16.mxu0 0
        %458 = vmatpush1.bf16.msra.mxu0 0
        %459 = vmatprep.subr.bf16.mxu0 0
        %460 = vmatpush1.bf16.msra.mxu0 0
        %461 = vmatprep.subr.bf16.mxu0 0
        %462 = vmatpush1.bf16.msra.mxu0 0
        %463 = vmatprep.subr.bf16.mxu0 0
        %464 = vmatpush1.bf16.msra.mxu0 0
        %465 = vmatprep.subr.bf16.mxu0 0
        %466 = vmatpush1.bf16.msra.mxu0 0
        %467 = vmatprep.subr.bf16.mxu0 0
        %468 = vmatpush1.bf16.msra.mxu0 0
        %469 = vmatprep.subr.bf16.mxu0 0
        %470 = vmatpush1.bf16.msra.mxu0 0
        %471 = vmatprep.subr.bf16.mxu0 0
        %472 = vmatpush1.bf16.msra.mxu0 0
        %473 = vmatprep.subr.bf16.mxu0 0
        %474 = vmatpush1.bf16.msra.mxu0 0
        %475 = vmatprep.mubr.bf16.mxu0 0
        %476 = vmatmul.mubr.bf16.gmra.mrb[0].mxu0 %v441
        %v477 = vpop.f32.mrb[0].mxu0
        %v478 = vadd.f32 0.0, %v477
        %v479 = vpop.f32.mrb[0].mxu0
        %v480 = vpop.f32.mrb[0].mxu0
        %v481 = vadd.f32 0.0, %v480
        %v482 = vpop.f32.mrb[0].mxu0
        %483 = vdwg.mxu0
        %484 = vst.msk [vmem:[%s375] sm:$0xff] %vm408, %v478
        %485 = vst.msk [vmem:[%s375 + $0x8] sm:$0xff] %vm408, %v481
        %v486 = vsel %vm408, %v478, 0.0
        %487 = vadd.xlane.f32.xlu0 %v486
        %v488 = vpop.xlane.xlu0 %487
        %v489 = vsel %vm408, %v481, 0.0
        %490 = vadd.xlane.f32.xlu0 %v489
        %v491 = vpop.xlane.xlu0 %490
        %v492 = vrcp.pop 16.0
        %v493 = vmul.f32 %v488, %v492
        %v494 = vmul.f32 %v491, %v492
        %v495 = vsub.f32 %v478, %v493
        %v496 = vsub.f32 %v481, %v494
        %v497 = vmul.f32 %v495, %v495
        %v498 = vmul.f32 %v496, %v496
        %v499 = vsel %vm408, %v497, 0.0
        %500 = vadd.xlane.f32.xlu0 %v499
        %v501 = vpop.xlane.xlu0 %500
        %v502 = vsel %vm408, %v498, 0.0
        %503 = vadd.xlane.f32.xlu0 %v502
        %v504 = vpop.xlane.xlu0 %503
        %vm505 = vcmask 7168
        %506 = vst.msk [vmem:[%s385] sm:$0xff] %vm505, %v488
        %507 = vst.msk [vmem:[%s385 + $0x8] sm:$0xff] %vm505, %v491
        %508 = vst.msk [vmem:[%s394] sm:$0xff] %vm505, %v501
        %509 = vst.msk [vmem:[%s394 + $0x8] sm:$0xff] %vm505, %v504
        %s510 = smul.u32 2, %s25
        %p511 = scmp.lt.s32.totalorder %s24, 1
        %s512 = scalar_select %p511, %s24, 1
        %p513 = scmp.lt.s32.totalorder %s510, 7
        %s514 = scalar_select %p513, %s510, 7
        %s515 = smul.addr %s512, 8
        %s516 = sadd.s32 %s514, %s515
        %s517 = smul.addr %s516, 8
        %s518 = scalar_lea.vmem %s4, %s517
        %p519 = scmp.lt.s32.totalorder %s24, 1
        %s520 = scalar_select %p519, %s24, 1
        %p521 = scmp.lt.s32.totalorder %s25, 3
        %s522 = scalar_select %p521, %s25, 3
        %s523 = smul.addr %s522, 2
        %s524 = smul.addr %s520, 8
        %s525 = sadd.s32 %s523, %s524
        %s526 = smul.addr %s525, 8
        %s527 = scalar_lea.vmem %s5, %s526
        %p528 = scmp.lt.s32.totalorder %s24, 1
        %s529 = scalar_select %p528, %s24, 1
        %p530 = scmp.lt.s32.totalorder %s25, 3
        %s531 = scalar_select %p530, %s25, 3
        %s532 = smul.addr %s531, 2
        %s533 = smul.addr %s529, 8
        %s534 = sadd.s32 %s532, %s533
        %s535 = smul.addr %s534, 8
        %s536 = scalar_lea.vmem %s6, %s535
        // Predicated region
        $region45: #{attention_operation.4} parent=35 // pred_check
          %p537 = pneg %p150
        $region46: #{attention_operation.4} parent=35 // pred_check_branch
          %539 = sbr.rel (%p537) target = $region48
        $region47: #{attention_operation.4} parent=35 // pred_region
          %s540 = smul.u32 2, %s25
        $region48: #{attention_operation.4} parent=35 // pred_fallthru
          _
        // Predicated region
        $region49: #{attention_operation.4} parent=35 // pred_check
          %p541 = pneg %p178
        $region50: #{attention_operation.4} parent=35 // pred_check_branch
          %543 = sbr.rel (%p541) target = $region52
        $region51: #{attention_operation.4} parent=35 // pred_region
          _
        $region52: #{attention_operation.4} parent=35 // pred_fallthru
          _
        // Predicated region
        $region53: #{attention_operation.4} parent=35 // pred_check
          %p544 = pneg %p206
        $region54: #{attention_operation.4} parent=35 // pred_check_branch
          %546 = sbr.rel (%p544) target = $region56
        $region55: #{attention_operation.4} parent=35 // pred_region
          _
        $region56: #{attention_operation.4} parent=35 // pred_fallthru
          _
      $region36: #{attention_operation.4} parent=5 // pred_fallthru
        _
      %p547 = scmp.le.s32.totalorder 2, %s15
      // Predicated region
      $region57: #{attention_operation.4} parent=5 // pred_check
        %p548 = pneg %p547
      $region58: #{attention_operation.4} parent=5 // pred_check_branch
        %550 = sbr.rel (%p548) target = $region60
      $region59: #{attention_operation.4} parent=5 // pred_region
        %s551 = ssub.s32 %s15, 2
        // Predicated region
        $region61: #{attention_operation.4} parent=59 // pred_check
          %p552 = pneg %p156
        $region62: #{attention_operation.4} parent=59 // pred_check_branch
          %554 = sbr.rel (%p552) target = $region64
        $region63: #{attention_operation.4} parent=59 // pred_region
          %s555 = smul.u32 2, %s27
          %p556 = scmp.lt.s32.totalorder %s26, 1
          %s557 = scalar_select %p556, %s26, 1
          %p558 = scmp.lt.s32.totalorder %s555, 7
          %s559 = scalar_select %p558, %s555, 7
          %s560 = smul.addr %s557, 8
          %s561 = sadd.s32 %s559, %s560
          %s562 = smul.addr %s561, 8
          %s563 = scalar_lea.vmem %s4, %s562
        $region64: #{attention_operation.4} parent=59 // pred_fallthru
          _
        // Predicated region
        $region65: #{attention_operation.4} parent=59 // pred_check
          %p564 = pneg %p184
        $region66: #{attention_operation.4} parent=59 // pred_check_branch
          %566 = sbr.rel (%p564) target = $region68
        $region67: #{attention_operation.4} parent=59 // pred_region
          %p567 = scmp.lt.s32.totalorder %s26, 1
          %s568 = scalar_select %p567, %s26, 1
          %p569 = scmp.lt.s32.totalorder %s27, 3
          %s570 = scalar_select %p569, %s27, 3
          %s571 = smul.addr %s570, 2
          %s572 = smul.addr %s568, 8
          %s573 = sadd.s32 %s571, %s572
          %s574 = smul.addr %s573, 8
          %s575 = scalar_lea.vmem %s5, %s574
        $region68: #{attention_operation.4} parent=59 // pred_fallthru
          _
        // Predicated region
        $region69: #{attention_operation.4} parent=59 // pred_check
          %p576 = pneg %p212
        $region70: #{attention_operation.4} parent=59 // pred_check_branch
          %578 = sbr.rel (%p576) target = $region72
        $region71: #{attention_operation.4} parent=59 // pred_region
          %p579 = scmp.lt.s32.totalorder %s26, 1
          %s580 = scalar_select %p579, %s26, 1
          %p581 = scmp.lt.s32.totalorder %s27, 3
          %s582 = scalar_select %p581, %s27, 3
          %s583 = smul.addr %s582, 2
          %s584 = smul.addr %s580, 8
          %s585 = sadd.s32 %s583, %s584
          %s586 = smul.addr %s585, 8
          %s587 = scalar_lea.vmem %s6, %s586
        $region72: #{attention_operation.4} parent=59 // pred_fallthru
          _
      $region60: #{attention_operation.4} parent=5 // pred_fallthru
        _
    $region6: #{attention_operation.4} parent=1 // loop_footer
      %s19 = sadd.s32 1, %s15
    $region7: #{attention_operation.4} parent=1 // loop_footer_branch
      %14 = sbr.rel target = $region3
    $region8: #{attention_operation.4} parent=1 // loop_exit
      _
    %588 = vsyncpa [#allocation3], 1
    %s589 = scalar_lea.sflag [#allocation3], 1
    %590 = vsyncpa %s589, 1
    %591 = vsyncpa [#allocation5], 1

// kernel: attention_operation.5
$region0: #{attention_operation.5}
  #allocation0 [shape = 'u32[]', space=smem, size = 0x4, offset = 0x4, fixed_abs, tag = 'smem constant byte address 0x4 - core index']
  #allocation1 [shape = 'u32[144,128]{1,0:T(1,128)}', space=vmem, size = 0x12000, scoped, tag = 'internal scratch']
  %s0 = inlined_call_operand.vmem [shape: f32[2,64,16], index: 0, kind: input, shape index: {}]
  %s1 = inlined_call_operand.vmem [shape: f32[64,1], index: 1, kind: input, shape index: {}]
  %s2 = inlined_call_operand.vmem [shape: f32[64,1], index: 2, kind: input, shape index: {}]
  %s3 = inlined_call_operand.vmem [shape: f32[2,64,16], index: 3, kind: output, shape index: {}]
  %s4 = sld [smem:[#allocation0]]
  $region45: #{attention_operation.5} parent=0
    _
  %s6 = ssub.s32 1, %s4
  %s7 = scalar_select 0, %s6, %s4
  loop: start=0, step=1, limit=4
  $region2: #{attention_operation.5} parent=0 // loop_pre_header
    _
  $region3: #{attention_operation.5} parent=0 // loop_header
    %s9 = sphi 0, %s13
    %p10 = scmp.ge.s32.totalorder %s9, 4
    %s19 = sphi 0, %s21
    %s22 = sphi 0, %s19
    %s23 = sphi 0, %s22
    %s39 = sphi 0, %s23
    %s43 = sphi 0, %s43
    %s45 = sphi 0, %s43
    %s46 = sphi 0, %s45
    %s60 = sphi 0, %s46
    %s64 = sphi 0, %s64
    %s66 = sphi 0, %s64
    %s67 = sphi 0, %s66
    %s81 = sphi 0, %s67
    %s87 = sphi 0, %s89
    %s90 = sphi 0, %s87
    %s91 = sphi 0, %s90
    %s107 = sphi 0, %s91
  $region4: #{attention_operation.5} parent=0 // loop_header_branch
    %12 = sbr.rel (%p10) target = $region8
  $region5: #{attention_operation.5} parent=0 // loop_body
    %s14 = ssub.s32 %s9, 1
    %s15 = ssub.s32 %s9, 2
    %s16 = sadd.s32 %s9, 1
    %s17 = ssub.s32 %s9, %s16
    %p18 = scmp.eq.s32.totalorder %s17, 0
    %s20 = sadd.s32 %s19, 1
    %s21 = scalar_select %p18, %s19, %s20
    %p24 = pneg %p18
    %p25 = scmp.eq.s32.totalorder %s9, 1
    %p26 = por %p24, %p25
    %p27 = scmp.ne.s32.totalorder %s19, %s22
    %p28 = scmp.eq.s32.totalorder %s9, 0
    %p29 = por %p27, %p28
    %p30 = scmp.ne.s32.totalorder %s19, %s22
    %p31 = scmp.eq.s32.totalorder %s14, 1
    %p32 = por %p30, %p31
    %p33 = scmp.ne.s32.totalorder %s22, %s23
    %p34 = scmp.eq.s32.totalorder %s14, 0
    %p35 = por %p33, %p34
    %p36 = scmp.ne.s32.totalorder %s22, %s23
    %p37 = scmp.eq.s32.totalorder %s15, 1
    %p38 = por %p36, %p37
    %p40 = scmp.ne.s32.totalorder %s23, %s39
    %p41 = scmp.eq.s32.totalorder %s15, 0
    %p42 = por %p40, %p41
    %s44 = sadd.s32 %s43, 1
    %p47 = scmp.eq.s32.totalorder %s9, 1
    %p48 = scmp.ne.s32.totalorder %s43, %s45
    %p49 = scmp.eq.s32.totalorder %s9, 0
    %p50 = por %p48, %p49
    %p51 = scmp.ne.s32.totalorder %s43, %s45
    %p52 = scmp.eq.s32.totalorder %s14, 1
    %p53 = por %p51, %p52
    %p54 = scmp.ne.s32.totalorder %s45, %s46
    %p55 = scmp.eq.s32.totalorder %s14, 0
    %p56 = por %p54, %p55
    %p57 = scmp.ne.s32.totalorder %s45, %s46
    %p58 = scmp.eq.s32.totalorder %s15, 1
    %p59 = por %p57, %p58
    %p61 = scmp.ne.s32.totalorder %s46, %s60
    %p62 = scmp.eq.s32.totalorder %s15, 0
    %p63 = por %p61, %p62
    %s65 = sadd.s32 %s64, 1
    %p68 = scmp.eq.s32.totalorder %s9, 1
    %p69 = scmp.ne.s32.totalorder %s64, %s66
    %p70 = scmp.eq.s32.totalorder %s9, 0
    %p71 = por %p69, %p70
    %p72 = scmp.ne.s32.totalorder %s64, %s66
    %p73 = scmp.eq.s32.totalorder %s14, 1
    %p74 = por %p72, %p73
    %p75 = scmp.ne.s32.totalorder %s66, %s67
    %p76 = scmp.eq.s32.totalorder %s14, 0
    %p77 = por %p75, %p76
    %p78 = scmp.ne.s32.totalorder %s66, %s67
    %p79 = scmp.eq.s32.totalorder %s15, 1
    %p80 = por %p78, %p79
    %p82 = scmp.ne.s32.totalorder %s67, %s81
    %p83 = scmp.eq.s32.totalorder %s15, 0
    %p84 = por %p82, %p83
    %s85 = ssub.s32 %s9, %s16
    %p86 = scmp.eq.s32.totalorder %s85, 0
    %s88 = sadd.s32 %s87, 1
    %s89 = scalar_select %p86, %s87, %s88
    %p92 = pneg %p86
    %p93 = scmp.eq.s32.totalorder %s9, 1
    %p94 = por %p92, %p93
    %p95 = scmp.ne.s32.totalorder %s87, %s90
    %p96 = scmp.eq.s32.totalorder %s9, 0
    %p97 = por %p95, %p96
    %p98 = scmp.ne.s32.totalorder %s87, %s90
    %p99 = scmp.eq.s32.totalorder %s14, 1
    %p100 = por %p98, %p99
    %p101 = scmp.ne.s32.totalorder %s90, %s91
    %p102 = scmp.eq.s32.totalorder %s14, 0
    %p103 = por %p101, %p102
    %p104 = scmp.ne.s32.totalorder %s90, %s91
    %p105 = scmp.eq.s32.totalorder %s15, 1
    %p106 = por %p104, %p105
    %p108 = scmp.ne.s32.totalorder %s91, %s107
    %p109 = scmp.eq.s32.totalorder %s15, 0
    %p110 = por %p108, %p109
    %p111 = scmp.le.s32.totalorder 1, %s9
    %p112 = scmp.lt.s32.totalorder %s9, 3
    %p113 = pnand %p111, %p112
    %p114 = pneg %p113
    // Predicated region
    $region9: #{attention_operation.5} parent=5 // pred_check
      _
    $region10: #{attention_operation.5} parent=5 // pred_check_branch
      %116 = sbr.rel (%p113) target = $region12
    $region11: #{attention_operation.5} parent=5 // pred_region
      %s117 = ssub.s32 %s9, 1
      // Predicated region
      $region13: #{attention_operation.5} parent=11 // pred_check
        %p118 = pneg %p56
      $region14: #{attention_operation.5} parent=11 // pred_check_branch
        %120 = sbr.rel (%p118) target = $region16
      $region15: #{attention_operation.5} parent=11 // pred_region
        _
      $region16: #{attention_operation.5} parent=11 // pred_fallthru
        _
      // Predicated region
      $region17: #{attention_operation.5} parent=11 // pred_check
        %p121 = pneg %p77
      $region18: #{attention_operation.5} parent=11 // pred_check_branch
        %123 = sbr.rel (%p121) target = $region20
      $region19: #{attention_operation.5} parent=11 // pred_region
        _
      $region20: #{attention_operation.5} parent=11 // pred_fallthru
        _
    $region12: #{attention_operation.5} parent=5 // pred_fallthru
      _
    %p124 = scmp.lt.s32.totalorder %s9, 2
    // Predicated region
    $region21: #{attention_operation.5} parent=5 // pred_check
      %p125 = pneg %p124
    $region22: #{attention_operation.5} parent=5 // pred_check_branch
      %127 = sbr.rel (%p125) target = $region24
    $region23: #{attention_operation.5} parent=5 // pred_region
      // Predicated region
      $region25: #{attention_operation.5} parent=23 // pred_check
        %p128 = pneg %p29
      $region26: #{attention_operation.5} parent=23 // pred_check_branch
        %130 = sbr.rel (%p128) target = $region28
      $region27: #{attention_operation.5} parent=23 // pred_region
        %p131 = scmp.lt.s32.totalorder %s9, 1
        %s132 = scalar_select %p131, %s9, 1
        %s133 = smul.addr %s132, 8
        %s134 = smul.addr %s133, 8
        %s135 = scalar_lea.vmem %s0, %s134
      $region28: #{attention_operation.5} parent=23 // pred_fallthru
        _
    $region24: #{attention_operation.5} parent=5 // pred_fallthru
      _
    %p136 = scmp.le.s32.totalorder 1, %s9
    %p137 = scmp.lt.s32.totalorder %s9, 3
    %p138 = pnand %p136, %p137
    %p139 = pneg %p138
    // Predicated region
    $region29: #{attention_operation.5} parent=5 // pred_check
      _
    $region30: #{attention_operation.5} parent=5 // pred_check_branch
      %141 = sbr.rel (%p138) target = $region32
    $region31: #{attention_operation.5} parent=5 // pred_region
      %s142 = ssub.s32 %s9, 1
      %p143 = scmp.lt.s32.totalorder %s14, 1
      %s144 = scalar_select %p143, %s14, 1
      %s145 = smul.addr %s144, 8
      %s146 = smul.addr %s145, 8
      %s147 = scalar_lea.vmem %s0, %s146
      %p148 = pneg %p35
      %p149 = pneg %p32
      %p150 = pneg %p56
      %p151 = pneg %p53
      %p152 = pneg %p77
      %p153 = pneg %p74
      %p154 = pneg %p103
      %p155 = pneg %p100
      %p156 = scmp.lt.s32.totalorder %s14, 1
      %s157 = scalar_select %p156, %s14, 1
      %s158 = smul.addr %s157, 8
      %s159 = smul.addr %s158, 8
      %s160 = scalar_lea.vmem %s3, %s159
      %p161 = scmp.lt.s32.totalorder %s14, 1
      %s162 = scalar_select %p161, %s14, 1
      %s163 = smul.addr %s162, 8
      %s164 = smul.addr %s163, 8
      %s165 = scalar_lea.vmem %s0, %s164
      %p166 = scmp.lt.s32.totalorder %s14, 1
      %s167 = scalar_select %p166, %s14, 1
      %s168 = smul.addr %s167, 8
      %s169 = smul.addr %s168, 8
      %s170 = scalar_lea.vmem %s3, %s169
      %v171 = vld [vmem:[%s165] sm:$0xff]
      %v172 = vld [vmem:[%s165 + $0x8] sm:$0xff]
      %v173 = vld [vmem:[%s165 + $0x10] sm:$0xff]
      %v174 = vld [vmem:[%s165 + $0x18] sm:$0xff]
      %v175 = vld [vmem:[%s165 + $0x20] sm:$0xff]
      %v176 = vld [vmem:[%s165 + $0x28] sm:$0xff]
      %v177 = vld [vmem:[%s165 + $0x30] sm:$0xff]
      %v178 = vld [vmem:[%s165 + $0x38] sm:$0xff]
      %v179 = vld [vmem:[%s1] sm:$0xff]
      %v180 = vld [vmem:[%s1 + $0x8] sm:$0xff]
      %v181 = vld [vmem:[%s1 + $0x10] sm:$0xff]
      %v182 = vld [vmem:[%s1 + $0x18] sm:$0xff]
      %v183 = vld [vmem:[%s1 + $0x20] sm:$0xff]
      %v184 = vld [vmem:[%s1 + $0x28] sm:$0xff]
      %v185 = vld [vmem:[%s1 + $0x30] sm:$0xff]
      %v186 = vld [vmem:[%s1 + $0x38] sm:$0xff]
      %188 = vset.pattern.permute.xlu0 0
      %189 = vperm.xlu0 %188, %v179
      %v190 = vpop.permute.xlu0 %189
      %193 = vset.pattern.permute.xlu0 0
      %194 = vperm.xlu0 %193, %v180
      %v195 = vpop.permute.xlu0 %194
      %198 = vset.pattern.permute.xlu0 0
      %199 = vperm.xlu0 %198, %v181
      %v200 = vpop.permute.xlu0 %199
      %203 = vset.pattern.permute.xlu0 0
      %204 = vperm.xlu0 %203, %v182
      %v205 = vpop.permute.xlu0 %204
      %208 = vset.pattern.permute.xlu0 0
      %209 = vperm.xlu0 %208, %v183
      %v210 = vpop.permute.xlu0 %209
      %213 = vset.pattern.permute.xlu0 0
      %214 = vperm.xlu0 %213, %v184
      %v215 = vpop.permute.xlu0 %214
      %218 = vset.pattern.permute.xlu0 0
      %219 = vperm.xlu0 %218, %v185
      %v220 = vpop.permute.xlu0 %219
      %223 = vset.pattern.permute.xlu0 0
      %224 = vperm.xlu0 %223, %v186
      %v225 = vpop.permute.xlu0 %224
      %v227 = vmul.f32 %v171, %v190
      %v228 = vmul.f32 %v172, %v195
      %v229 = vmul.f32 %v173, %v200
      %v230 = vmul.f32 %v174, %v205
      %v231 = vmul.f32 %v175, %v210
      %v232 = vmul.f32 %v176, %v215
      %v233 = vmul.f32 %v177, %v220
      %v234 = vmul.f32 %v178, %v225
      %v235 = vld [vmem:[%s2] sm:$0xff]
      %v236 = vld [vmem:[%s2 + $0x8] sm:$0xff]
      %v237 = vld [vmem:[%s2 + $0x10] sm:$0xff]
      %v238 = vld [vmem:[%s2 + $0x18] sm:$0xff]
      %v239 = vld [vmem:[%s2 + $0x20] sm:$0xff]
      %v240 = vld [vmem:[%s2 + $0x28] sm:$0xff]
      %v241 = vld [vmem:[%s2 + $0x30] sm:$0xff]
      %v242 = vld [vmem:[%s2 + $0x38] sm:$0xff]
      %244 = vset.pattern.permute.xlu0 0
      %245 = vperm.xlu0 %244, %v235
      %v246 = vpop.permute.xlu0 %245
      %249 = vset.pattern.permute.xlu0 0
      %250 = vperm.xlu0 %249, %v236
      %v251 = vpop.permute.xlu0 %250
      %254 = vset.pattern.permute.xlu0 0
      %255 = vperm.xlu0 %254, %v237
      %v256 = vpop.permute.xlu0 %255
      %259 = vset.pattern.permute.xlu0 0
      %260 = vperm.xlu0 %259, %v238
      %v261 = vpop.permute.xlu0 %260
      %264 = vset.pattern.permute.xlu0 0
      %265 = vperm.xlu0 %264, %v239
      %v266 = vpop.permute.xlu0 %265
      %269 = vset.pattern.permute.xlu0 0
      %270 = vperm.xlu0 %269, %v240
      %v271 = vpop.permute.xlu0 %270
      %274 = vset.pattern.permute.xlu0 0
      %275 = vperm.xlu0 %274, %v241
      %v276 = vpop.permute.xlu0 %275
      %279 = vset.pattern.permute.xlu0 0
      %280 = vperm.xlu0 %279, %v242
      %v281 = vpop.permute.xlu0 %280
      %v283 = vadd.f32 %v227, %v246
      %v284 = vadd.f32 %v228, %v251
      %v285 = vadd.f32 %v229, %v256
      %v286 = vadd.f32 %v230, %v261
      %v287 = vadd.f32 %v231, %v266
      %v288 = vadd.f32 %v232, %v271
      %v289 = vadd.f32 %v233, %v276
      %v290 = vadd.f32 %v234, %v281
      %v291 = vmul.f32 %v283, 0.5
      %v292 = vmul.f32 %v284, 0.5
      %v293 = vmul.f32 %v285, 0.5
      %v294 = vmul.f32 %v286, 0.5
      %v295 = vmul.f32 %v287, 0.5
      %v296 = vmul.f32 %v288, 0.5
      %v297 = vmul.f32 %v289, 0.5
      %v298 = vmul.f32 %v290, 0.5
      %v299 = vmul.f32 %v283, 0.70710677
      %v300 = vmul.f32 %v284, 0.70710677
      %v301 = vmul.f32 %v285, 0.70710677
      %v302 = vmul.f32 %v286, 0.70710677
      %v303 = vmul.f32 %v287, 0.70710677
      %v304 = vmul.f32 %v288, 0.70710677
      %v305 = vmul.f32 %v289, 0.70710677
      %v306 = vmul.f32 %v290, 0.70710677
      %v307 = vand.u32 2147483647, %v299
      %v308 = vand.u32 2147483647, %v300
      %v309 = vand.u32 2147483647, %v301
      %v310 = vand.u32 2147483647, %v302
      %v311 = vand.u32 2147483647, %v303
      %v312 = vand.u32 2147483647, %v304
      %v313 = vand.u32 2147483647, %v305
      %v314 = vand.u32 2147483647, %v306
      %v315 = vmul.f32 %v307, 0.3275911
      %v316 = vmul.f32 %v308, 0.3275911
      %v317 = vmul.f32 %v309, 0.3275911
      %v318 = vmul.f32 %v310, 0.3275911
      %v319 = vmul.f32 %v311, 0.3275911
      %v320 = vmul.f32 %v312, 0.3275911
      %v321 = vmul.f32 %v313, 0.3275911
      %v322 = vmul.f32 %v314, 0.3275911
      %v323 = vadd.f32 %v315, 1.0
      %v324 = vadd.f32 %v316, 1.0
      %v325 = vadd.f32 %v317, 1.0
      %v326 = vadd.f32 %v318, 1.0
      %v327 = vadd.f32 %v319, 1.0
      %v328 = vadd.f32 %v320, 1.0
      %v329 = vadd.f32 %v321, 1.0
      %v330 = vadd.f32 %v322, 1.0
      %v331 = vrcp.pop %v323
      %v332 = vmul.f32 1.0, %v331
      %v333 = vrcp.pop %v324
      %v334 = vmul.f32 1.0, %v333
      %v335 = vrcp.pop %v325
      %v336 = vmul.f32 1.0, %v335
      %v337 = vrcp.pop %v326
      %v338 = vmul.f32 1.0, %v337
      %v339 = vrcp.pop %v327
      %v340 = vmul.f32 1.0, %v339
      %v341 = vrcp.pop %v328
      %v342 = vmul.f32 1.0, %v341
      %v343 = vrcp.pop %v329
      %v344 = vmul.f32 1.0, %v343
      %v345 = vrcp.pop %v330
      %v346 = vmul.f32 1.0, %v345
      %v347 = vmul.f32 %v332, 1.0614054
      %v348 = vmul.f32 %v334, 1.0614054
      %v349 = vmul.f32 %v336, 1.0614054
      %v350 = vmul.f32 %v338, 1.0614054
      %v351 = vmul.f32 %v340, 1.0614054
      %v352 = vmul.f32 %v342, 1.0614054
      %v353 = vmul.f32 %v344, 1.0614054
      %v354 = vmul.f32 %v346, 1.0614054
      %v355 = vadd.f32 %v347, -1.4531521
      %v356 = vadd.f32 %v348, -1.4531521
      %v357 = vadd.f32 %v349, -1.4531521
      %v358 = vadd.f32 %v350, -1.4531521
      %v359 = vadd.f32 %v351, -1.4531521
      %v360 = vadd.f32 %v352, -1.4531521
      %v361 = vadd.f32 %v353, -1.4531521
      %v362 = vadd.f32 %v354, -1.4531521
      %v363 = vmul.f32 %v355, %v332
      %v364 = vmul.f32 %v356, %v334
      %v365 = vmul.f32 %v357, %v336
      %v366 = vmul.f32 %v358, %v338
      %v367 = vmul.f32 %v359, %v340
      %v368 = vmul.f32 %v360, %v342
      %v369 = vmul.f32 %v361, %v344
      %v370 = vmul.f32 %v362, %v346
      %v371 = vadd.f32 %v363, 1.4214138
      %v372 = vadd.f32 %v364, 1.4214138
      %v373 = vadd.f32 %v365, 1.4214138
      %v374 = vadd.f32 %v366, 1.4214138
      %v375 = vadd.f32 %v367, 1.4214138
      %v376 = vadd.f32 %v368, 1.4214138
      %v377 = vadd.f32 %v369, 1.4214138
      %v378 = vadd.f32 %v370, 1.4214138
      %v379 = vmul.f32 %v371, %v332
      %v380 = vmul.f32 %v372, %v334
      %v381 = vmul.f32 %v373, %v336
      %v382 = vmul.f32 %v374, %v338
      %v383 = vmul.f32 %v375, %v340
      %v384 = vmul.f32 %v376, %v342
      %v385 = vmul.f32 %v377, %v344
      %v386 = vmul.f32 %v378, %v346
      %v387 = vadd.f32 %v379, -0.28449672
      %v388 = vadd.f32 %v380, -0.28449672
      %v389 = vadd.f32 %v381, -0.28449672
      %v390 = vadd.f32 %v382, -0.28449672
      %v391 = vadd.f32 %v383, -0.28449672
      %v392 = vadd.f32 %v384, -0.28449672
      %v393 = vadd.f32 %v385, -0.28449672
      %v394 = vadd.f32 %v386, -0.28449672
      %v395 = vmul.f32 %v387, %v332
      %v396 = vmul.f32 %v388, %v334
      %v397 = vmul.f32 %v389, %v336
      %v398 = vmul.f32 %v390, %v338
      %v399 = vmul.f32 %v391, %v340
      %v400 = vmul.f32 %v392, %v342
      %v401 = vmul.f32 %v393, %v344
      %v402 = vmul.f32 %v394, %v346
      %v403 = vadd.f32 %v395, 0.2548296
      %v404 = vadd.f32 %v396, 0.2548296
      %v405 = vadd.f32 %v397, 0.2548296
      %v406 = vadd.f32 %v398, 0.2548296
      %v407 = vadd.f32 %v399, 0.2548296
      %v408 = vadd.f32 %v400, 0.2548296
      %v409 = vadd.f32 %v401, 0.2548296
      %v410 = vadd.f32 %v402, 0.2548296
      %v411 = vmul.f32 %v403, %v332
      %v412 = vmul.f32 %v404, %v334
      %v413 = vmul.f32 %v405, %v336
      %v414 = vmul.f32 %v406, %v338
      %v415 = vmul.f32 %v407, %v340
      %v416 = vmul.f32 %v408, %v342
      %v417 = vmul.f32 %v409, %v344
      %v418 = vmul.f32 %v410, %v346
      %v419 = vsub.f32 0.0, %v307
      %v420 = vsub.f32 0.0, %v308
      %v421 = vsub.f32 0.0, %v309
      %v422 = vsub.f32 0.0, %v310
      %v423 = vsub.f32 0.0, %v311
      %v424 = vsub.f32 0.0, %v312
      %v425 = vsub.f32 0.0, %v313
      %v426 = vsub.f32 0.0, %v314
      %v427 = vmul.f32 %v419, %v307
      %v428 = vmul.f32 %v420, %v308
      %v429 = vmul.f32 %v421, %v309
      %v430 = vmul.f32 %v422, %v310
      %v431 = vmul.f32 %v423, %v311
      %v432 = vmul.f32 %v424, %v312
      %v433 = vmul.f32 %v425, %v313
      %v434 = vmul.f32 %v426, %v314
      %v435 = vmul.f32 %v427, 1.442695
      %v436 = vpow.pop %v435
      %v437 = vmul.f32 %v428, 1.442695
      %v438 = vpow.pop %v437
      %v439 = vmul.f32 %v429, 1.442695
      %v440 = vpow.pop %v439
      %v441 = vmul.f32 %v430, 1.442695
      %v442 = vpow.pop %v441
      %v443 = vmul.f32 %v431, 1.442695
      %v444 = vpow.pop %v443
      %v445 = vmul.f32 %v432, 1.442695
      %v446 = vpow.pop %v445
      %v447 = vmul.f32 %v433, 1.442695
      %v448 = vpow.pop %v447
      %v449 = vmul.f32 %v434, 1.442695
      %v450 = vpow.pop %v449
      %v451 = vmul.f32 %v411, %v436
      %v452 = vmul.f32 %v412, %v438
      %v453 = vmul.f32 %v413, %v440
      %v454 = vmul.f32 %v414, %v442
      %v455 = vmul.f32 %v415, %v444
      %v456 = vmul.f32 %v416, %v446
      %v457 = vmul.f32 %v417, %v448
      %v458 = vmul.f32 %v418, %v450
      %v459 = vsub.f32 1.0, %v451
      %v460 = vsub.f32 1.0, %v452
      %v461 = vsub.f32 1.0, %v453
      %v462 = vsub.f32 1.0, %v454
      %v463 = vsub.f32 1.0, %v455
      %v464 = vsub.f32 1.0, %v456
      %v465 = vsub.f32 1.0, %v457
      %v466 = vsub.f32 1.0, %v458
      %vm467 = vcmp.ge.f32.partialorder %v299, 0.0
      %vm468 = vcmp.ge.f32.partialorder %v300, 0.0
      %vm469 = vcmp.ge.f32.partialorder %v301, 0.0
      %vm470 = vcmp.ge.f32.partialorder %v302, 0.0
      %vm471 = vcmp.ge.f32.partialorder %v303, 0.0
      %vm472 = vcmp.ge.f32.partialorder %v304, 0.0
      %vm473 = vcmp.ge.f32.partialorder %v305, 0.0
      %vm474 = vcmp.ge.f32.partialorder %v306, 0.0
      %v475 = vsub.f32 0.0, %v459
      %v476 = vsub.f32 0.0, %v460
      %v477 = vsub.f32 0.0, %v461
      %v478 = vsub.f32 0.0, %v462
      %v479 = vsub.f32 0.0, %v463
      %v480 = vsub.f32 0.0, %v464
      %v481 = vsub.f32 0.0, %v465
      %v482 = vsub.f32 0.0, %v466
      %v483 = vsel %vm467, %v459, %v475
      %v484 = vsel %vm468, %v460, %v476
      %v485 = vsel %vm469, %v461, %v477
      %v486 = vsel %vm470, %v462, %v478
      %v487 = vsel %vm471, %v463, %v479
      %v488 = vsel %vm472, %v464, %v480
      %v489 = vsel %vm473, %v465, %v481
      %v490 = vsel %vm474, %v466, %v482
      %v491 = vadd.f32 %v483, 1.0
      %v492 = vadd.f32 %v484, 1.0
      %v493 = vadd.f32 %v485, 1.0
      %v494 = vadd.f32 %v486, 1.0
      %v495 = vadd.f32 %v487, 1.0
      %v496 = vadd.f32 %v488, 1.0
      %v497 = vadd.f32 %v489, 1.0
      %v498 = vadd.f32 %v490, 1.0
      %v499 = vmul.f32 %v291, %v491
      %v500 = vmul.f32 %v292, %v492
      %v501 = vmul.f32 %v293, %v493
      %v502 = vmul.f32 %v294, %v494
      %v503 = vmul.f32 %v295, %v495
      %v504 = vmul.f32 %v296, %v496
      %v505 = vmul.f32 %v297, %v497
      %v506 = vmul.f32 %v298, %v498
      %vm507 = vcmask 130048
      %508 = vst.msk [vmem:[%s170] sm:$0xff] %vm507, %v499
      %509 = vst.msk [vmem:[%s170 + $0x8] sm:$0xff] %vm507, %v500
      %510 = vst.msk [vmem:[%s170 + $0x10] sm:$0xff] %vm507, %v501
      %511 = vst.msk [vmem:[%s170 + $0x18] sm:$0xff] %vm507, %v502
      %512 = vst.msk [vmem:[%s170 + $0x20] sm:$0xff] %vm507, %v503
      %513 = vst.msk [vmem:[%s170 + $0x28] sm:$0xff] %vm507, %v504
      %514 = vst.msk [vmem:[%s170 + $0x30] sm:$0xff] %vm507, %v505
      %515 = vst.msk [vmem:[%s170 + $0x38] sm:$0xff] %vm507, %v506
      %p516 = scmp.lt.s32.totalorder %s14, 1
      %s517 = scalar_select %p516, %s14, 1
      %s518 = smul.addr %s517, 8
      %s519 = smul.addr %s518, 8
      %s520 = scalar_lea.vmem %s3, %s519
      // Predicated region
      $region33: #{attention_operation.5} parent=31 // pred_check
        %p521 = pneg %p100
      $region34: #{attention_operation.5} parent=31 // pred_check_branch
        %523 = sbr.rel (%p521) target = $region36
      $region35: #{attention_operation.5} parent=31 // pred_region
        _
      $region36: #{attention_operation.5} parent=31 // pred_fallthru
        _
    $region32: #{attention_operation.5} parent=5 // pred_fallthru
      _
    %p524 = scmp.le.s32.totalorder 2, %s9
    // Predicated region
    $region37: #{attention_operation.5} parent=5 // pred_check
      %p525 = pneg %p524
    $region38: #{attention_operation.5} parent=5 // pred_check_branch
      %527 = sbr.rel (%p525) target = $region40
    $region39: #{attention_operation.5} parent=5 // pred_region
      %s528 = ssub.s32 %s9, 2
      // Predicated region
      $region41: #{attention_operation.5} parent=39 // pred_check
        %p529 = pneg %p106
      $region42: #{attention_operation.5} parent=39 // pred_check_branch
        %531 = sbr.rel (%p529) target = $region44
      $region43: #{attention_operation.5} parent=39 // pred_region
        %p532 = scmp.lt.s32.totalorder %s15, 1
        %s533 = scalar_select %p532, %s15, 1
        %s534 = smul.addr %s533, 8
        %s535 = smul.addr %s534, 8
        %s536 = scalar_lea.vmem %s3, %s535
      $region44: #{attention_operation.5} parent=39 // pred_fallthru
        _
    $region40: #{attention_operation.5} parent=5 // pred_fallthru
      _
  $region6: #{attention_operation.5} parent=0 // loop_footer
    %s13 = sadd.s32 1, %s9
  $region7: #{attention_operation.5} parent=0 // loop_footer_branch
    %8 = sbr.rel target = $region3
  $region8: #{attention_operation.5} parent=0 // loop_exit
    _

</llo_original>
